<compile_context>
chip_gen: v5e
topology: v5e:2x2
jax: 0.10.0
libtpu: 0.0.40
codegen_flags: <defaults>
</compile_context>

<pallas_src>
import numpy as np

import jax
import jax.numpy as jnp
from jax.experimental import pallas as pl
from jax.experimental.pallas import tpu as pltpu

# -----------------------------------------------------------------------------
# Model configuration (consistent with the nn.Module instantiation)
# -----------------------------------------------------------------------------
BATCH = 2
TIME = 32
NUM_CLASSES = 6
N_FFTS = (64, 128)
INPUT_SHAPES = {64: (BATCH, 1, 16, TIME), 128: (BATCH, 1, 32, TIME)}
# conv1: 3x3, stride (1,1) for nfft=64 and (2,1) for nfft=128, 4 filters each.
# pools: 2x2 stride 2; conv2: 3x3 stride 1, 8 filters; all *_pad_same = True.
# Resulting sizes: cnn1_out (2,8,8,16) -> features (2,8,4,8) -> H=32, T_out=8.
H_RNN = 32
T_OUT = 8

_VMEM = pl.BlockSpec(memory_space=pltpu.MemorySpace.VMEM)


def _sigmoid(x):
    # sigmoid(x) = 0.5*(tanh(x/2)+1): one EUP op, no exp overflow, no divide.
    return 0.5 * jnp.tanh(0.5 * x) + 0.5


# -----------------------------------------------------------------------------
# The single fused kernel
# -----------------------------------------------------------------------------
def _fused_kernel(xa_ref, w1_ref, b1_ref, w2_ref, b2_ref, wih_ref, blstm_ref,
                  whh_ref, fcw_ref, fcb_ref, out_ref, hbuf_ref):
    f32 = jnp.float32

    # ---- conv1 (both n_fft branches) + bias + ReLU + maxpool1: ONE matmul --
    # xa rows = (time_parity, pooled_time, batch); K packs (time_phase s, freq)
    # for both branches; w1 columns pack the 4 pooling phases (pf, pt), so the
    # sums over the 3 time taps and both freq taps happen in the contraction.
    d1 = jnp.dot(xa_ref[...], w1_ref[...], preferred_element_type=f32)  # (32,256)
    m1 = jnp.maximum(jnp.maximum(d1[:, 0:64], d1[:, 64:128]),
                     jnp.maximum(d1[:, 128:192], d1[:, 192:256]))
    feat1 = jnp.maximum(m1 + b1_ref[...], 0.0)        # (32, 64) rows=(par,w,b)

    # ---- conv2 LHS built from the VMEM-resident conv1 output ---------------
    # Time phase s2 needs input time v = 2w + s2 - 1; even-v rows live in
    # feat1[0:16], odd-v rows in feat1[16:32]; out-of-range rows are zero pad.
    ez = jnp.zeros((2, 64), f32)
    big2 = jnp.concatenate([
        jnp.concatenate([ez, feat1[16:30]], axis=0),   # s2=0 : v = 2w-1
        feat1[0:16],                                   # s2=1 : v = 2w
        feat1[16:32],                                  # s2=2 : v = 2w+1
        jnp.concatenate([feat1[2:16], ez], axis=0),    # s2=3 : v = 2w+2
    ], axis=1)                                         # (16, 256)

    # ---- conv2 + bias + ReLU + maxpool2: ONE matmul -------------------------
    d2 = jnp.dot(big2, w2_ref[...], preferred_element_type=f32)         # (16,128)
    m2 = jnp.maximum(jnp.maximum(d2[:, 0:32], d2[:, 32:64]),
                     jnp.maximum(d2[:, 64:96], d2[:, 96:128]))
    feat2 = jnp.maximum(m2 + b2_ref[...], 0.0)         # (16, 32) rows=(t,b)

    # ---- bidirectional LSTM: input projection hoisted out of the recurrence.
    zx = (jnp.dot(feat2, wih_ref[...], preferred_element_type=f32)
          + blstm_ref[...])                            # (16, 256)
    whh = whh_ref[...]
    h = jnp.zeros((4, 64), f32)
    c = jnp.zeros((4, 64), f32)
    for t in range(T_OUT):
        rt = T_OUT - 1 - t
        # rows 0:2 = forward direction (time t), rows 2:4 = backward (time rt);
        # block-diagonal whh keeps the directions independent (the off-block
        # halves of z/c/h carry harmless finite values and are never read).
        zx4 = jnp.concatenate([zx[2 * t:2 * t + 2, :],
                               zx[2 * rt:2 * rt + 2, :]], axis=0)       # (4,256)
        z = zx4 + jnp.dot(h, whh, preferred_element_type=f32)
        gi = _sigmoid(z[:, 0:64])
        gf = _sigmoid(z[:, 64:128])
        gg = jnp.tanh(z[:, 128:192])
        go = _sigmoid(z[:, 192:256])
        c = gf * c + gi * gg
        h = go * jnp.tanh(c)
        hbuf_ref[2 * t:2 * t + 2, 0:32] = h[0:2, 0:32]         # fwd @ time t
        hbuf_ref[2 * rt:2 * rt + 2, 32:64] = h[2:4, 32:64]     # bwd @ time rt

    # ---- final linear layer: one matmul + one lane-dense (16,128) store ----
    out_ref[...] = (jnp.dot(hbuf_ref[...], fcw_ref[...],
                            preferred_element_type=f32) + fcb_ref[...])


def _fused_call(xa, prep):
    return pl.pallas_call(
        _fused_kernel,
        out_shape=jax.ShapeDtypeStruct((2 * T_OUT, 128), jnp.float32),
        in_specs=[_VMEM] * 10,
        out_specs=_VMEM,
        scratch_shapes=[pltpu.VMEM((2 * T_OUT, 2 * H_RNN), jnp.float32)],
    )(xa, prep["w1"], prep["b1"], prep["w2"], prep["b2"], prep["wih"],
      prep["b_lstm"], prep["whh"], prep["fcw"], prep["fcb"])


# -----------------------------------------------------------------------------
# XLA layout glue in front of the kernel (pad + time-phase split of raw input)
# -----------------------------------------------------------------------------
def _conv1_lhs(x64, x128):
    """x64 (B,16,32), x128 (B,32,32) -> (32, 256) matmul LHS.

    rows = parity*16 + pooled_time*2 + batch; cols = s*64 + packed freq where
    s in 0..3 is the padded-time phase (cols 0..17 nfft=64, 18..51 nfft=128).
    """
    xp64 = jnp.pad(x64, ((0, 0), (1, 1), (1, 1)))      # (B, 18, 34)
    xp128 = jnp.pad(x128, ((0, 0), (1, 1), (1, 1)))    # (B, 34, 34)
    blocks = []
    for s in range(4):
        parts = []
        for xp in (xp64, xp128):
            f = xp.shape[1]
            sl = jnp.transpose(xp[:, :, s:s + 32:2], (2, 0, 1))    # (16, B, f)
            sl = sl.reshape(8, 2, BATCH, f)                        # (w,par,b,f)
            sl = jnp.transpose(sl, (1, 0, 2, 3)).reshape(32, f)    # ((par,w,b),f)
            parts.append(sl)
        blk = jnp.concatenate(parts, axis=1)                       # (32, 52)
        blocks.append(jnp.pad(blk, ((0, 0), (0, 64 - blk.shape[1]))))
    return jnp.concatenate(blocks, axis=1)                         # (32, 256)


@jax.jit
def forward(prep, x64, x128):
    xa = _conv1_lhs(x64[:, 0], x128[:, 0])
    slab = _fused_call(xa, prep)                        # (16, 128)
    logits = slab[:, :NUM_CLASSES].reshape(T_OUT, BATCH, NUM_CLASSES)
    return jnp.transpose(logits, (1, 2, 0))             # (B, classes, T)


# -----------------------------------------------------------------------------
# Parameters: deterministic synthetic init + one-time repacking for the kernel
# -----------------------------------------------------------------------------
def init_params(key):
    params = {}
    ks = iter(jax.random.split(key, 24))

    def rnd(shape, scale=0.1):
        return jax.random.normal(next(ks), shape, dtype=jnp.float32) * scale

    for nfft in N_FFTS:
        params[f"conv1_w_{nfft}"] = rnd((4, 1, 3, 3))
        params[f"conv1_b_{nfft}"] = rnd((4,))
    params["conv2_w"] = rnd((8, 8, 3, 3))
    params["conv2_b"] = rnd((8,))
    H = H_RNN
    for d in ("f", "b"):                                # forward / backward
        params[f"w_ih_{d}"] = rnd((4 * H, H))
        params[f"w_hh_{d}"] = rnd((4 * H, H))
        params[f"b_ih_{d}"] = rnd((4 * H,))
        params[f"b_hh_{d}"] = rnd((4 * H,))
    params["fc_w"] = rnd((NUM_CLASSES, 2 * H))
    params["fc_b"] = rnd((NUM_CLASSES,))
    return params


def prepare_params(params):
    """One-time numpy repacking (hoisted out of the forward pass)."""
    out = {}

    # conv1: both branches, all 3 time taps and all 4 pooling phases in ONE
    # matmul.  K rows = time_phase*64 + packed padded-freq (0..17 for nfft=64,
    # 18..51 for nfft=128); N cols = (pf*2+pt)*64 + global_channel*8 + pooled_f.
    w64 = np.asarray(params["conv1_w_64"], np.float32)[:, 0]     # (4, 3, 3)
    w128 = np.asarray(params["conv1_w_128"], np.float32)[:, 0]   # (4, 3, 3)
    w1 = np.zeros((256, 256), np.float32)
    for pt in range(2):
        for kw in range(3):
            s = pt + kw
            for pf in range(2):
                cblk = (pf * 2 + pt) * 64
                for c in range(4):
                    for kh in range(3):
                        for u in range(8):
                            r64 = s * 64 + (2 * u + pf) + kh            # stride 1
                            w1[r64, cblk + c * 8 + u] = w64[c, kh, kw]
                            r128 = s * 64 + 18 + 2 * (2 * u + pf) + kh  # stride 2
                            w1[r128, cblk + (4 + c) * 8 + u] = w128[c, kh, kw]
    out["w1"] = jnp.asarray(w1)
    out["b1"] = jnp.asarray(np.concatenate(
        [np.repeat(np.asarray(params["conv1_b_64"], np.float32), 8),
         np.repeat(np.asarray(params["conv1_b_128"], np.float32), 8)])[None, :])

    # conv2: same trick.  K rows = time_phase*64 + in_channel*8 + in_freq
    # (out-of-range freq taps are simply omitted -> implicit zero padding);
    # N cols = (pf*2+pt)*32 + out_channel*4 + pooled_freq.
    w2 = np.asarray(params["conv2_w"], np.float32)               # (8, 8, 3, 3)
    w2p = np.zeros((256, 128), np.float32)
    for pt in range(2):
        for kw in range(3):
            s2 = pt + kw
            for pf in range(2):
                cblk = (pf * 2 + pt) * 32
                for d in range(8):
                    for c in range(8):
                        for kh in range(3):
                            for u2 in range(4):
                                uin = 2 * u2 + pf + kh - 1
                                if 0 <= uin <= 7:
                                    w2p[s2 * 64 + c * 8 + uin,
                                        cblk + d * 4 + u2] = w2[d, c, kh, kw]
    out["w2"] = jnp.asarray(w2p)
    out["b2"] = jnp.asarray(
        np.repeat(np.asarray(params["conv2_b"], np.float32), 4)[None, :])

    # Bidirectional LSTM (gate order i, f, g, o), both directions packed:
    #  wih (32,256): feature -> gates for both dirs (hoisted, used once);
    #  whh (64,256): block-diagonal hidden -> gates;  bias row (1,256).
    H = H_RNN
    wih = np.zeros((H, 8 * H), np.float32)
    whh = np.zeros((2 * H, 8 * H), np.float32)
    blstm = np.zeros((1, 8 * H), np.float32)
    w_ih = {"f": np.asarray(params["w_ih_f"], np.float32),
            "b": np.asarray(params["w_ih_b"], np.float32)}
    w_hh = {"f": np.asarray(params["w_hh_f"], np.float32),
            "b": np.asarray(params["w_hh_b"], np.float32)}
    bias = {d: np.asarray(params[f"b_ih_{d}"], np.float32)
               + np.asarray(params[f"b_hh_{d}"], np.float32) for d in ("f", "b")}
    for g in range(4):
        gs = slice(g * H, (g + 1) * H)
        wih[:, g * 2 * H:g * 2 * H + H] = w_ih["f"][gs, :].T
        wih[:, g * 2 * H + H:(g + 1) * 2 * H] = w_ih["b"][gs, :].T
        whh[0:H, g * 2 * H:g * 2 * H + H] = w_hh["f"][gs, :].T
        whh[H:2 * H, g * 2 * H + H:(g + 1) * 2 * H] = w_hh["b"][gs, :].T
        blstm[0, g * 2 * H:g * 2 * H + H] = bias["f"][gs]
        blstm[0, g * 2 * H + H:(g + 1) * 2 * H] = bias["b"][gs]
    out["wih"] = jnp.asarray(wih)
    out["whh"] = jnp.asarray(whh)
    out["b_lstm"] = jnp.asarray(blstm)

    # FC padded to a lane-dense 128-wide output slab.
    fcw = np.zeros((2 * H, 128), np.float32)
    fcw[:, :NUM_CLASSES] = np.asarray(params["fc_w"], np.float32).T
    fcb = np.zeros((1, 128), np.float32)
    fcb[0, :NUM_CLASSES] = np.asarray(params["fc_b"], np.float32)
    out["fcw"] = jnp.asarray(fcw)
    out["fcb"] = jnp.asarray(fcb)
    return out


# -----------------------------------------------------------------------------
# Pure-JAX reference (mirrors the PyTorch module) for validation
# -----------------------------------------------------------------------------
def ref_forward(params, x64, x128):
    def pad_conv(x):
        return jnp.pad(x, ((0, 0), (0, 0), (1, 1), (1, 1)))

    def pad_pool(x):
        return jnp.pad(x, ((0, 0), (0, 0), (0, 1), (0, 1)))

    def conv(x, w, b, stride):
        y = jax.lax.conv_general_dilated(
            x, w, window_strides=stride, padding="VALID",
            dimension_numbers=("NCHW", "OIHW", "NCHW"))
        return y + b[None, :, None, None]

    def mpool(x):
        return jax.lax.reduce_window(x, -jnp.inf, jax.lax.max,
                                     (1, 1, 2, 2), (1, 1, 2, 2), "VALID")

    chans = []
    for nfft, xx, stride in ((64, x64, (1, 1)), (128, x128, (2, 1))):
        y = jax.nn.relu(conv(pad_conv(xx), params[f"conv1_w_{nfft}"],
                             params[f"conv1_b_{nfft}"], stride))
        chans.append(mpool(pad_pool(y)))
    c1 = jnp.concatenate(chans, axis=1)
    y = jax.nn.relu(conv(pad_conv(c1), params["conv2_w"], params["conv2_b"], (1, 1)))
    feat = mpool(pad_pool(y))                               # (B, 8, 4, 8)
    B, C, F, T = feat.shape
    H = C * F
    seq = jnp.transpose(feat.reshape(B, H, T), (2, 0, 1))   # (T, B, H)

    def lstm_dir(s, wih, whh, bih, bhh):
        h = jnp.zeros((B, H), jnp.float32)
        c = jnp.zeros((B, H), jnp.float32)
        outs = []
        for t in range(s.shape[0]):
            z = s[t] @ wih.T + bih + h @ whh.T + bhh
            i, f, g, o = jnp.split(z, 4, axis=1)
            i, f, o = jax.nn.sigmoid(i), jax.nn.sigmoid(f), jax.nn.sigmoid(o)
            g = jnp.tanh(g)
            c = f * c + i * g
            h = o * jnp.tanh(c)
            outs.append(h)
        return jnp.stack(outs, axis=0)

    of = lstm_dir(seq, params["w_ih_f"], params["w_hh_f"],
                  params["b_ih_f"], params["b_hh_f"])
    ob = lstm_dir(seq[::-1], params["w_ih_b"], params["w_hh_b"],
                  params["b_ih_b"], params["b_hh_b"])[::-1]
    rnn = jnp.concatenate([of, ob], axis=-1)                # (T, B, 2H)
    logits = jnp.transpose(rnn, (1, 0, 2)) @ params["fc_w"].T + params["fc_b"]
    return jnp.transpose(logits, (0, 2, 1))                 # (B, classes, T)


# -----------------------------------------------------------------------------
if __name__ == "__main__":
    key = jax.random.PRNGKey(0)
    pkey, k64, k128 = jax.random.split(key, 3)
    params = init_params(pkey)
    prep = prepare_params(params)

    x64 = jax.random.normal(k64, INPUT_SHAPES[64], dtype=jnp.float32)
    x128 = jax.random.normal(k128, INPUT_SHAPES[128], dtype=jnp.float32)

    logits = jax.block_until_ready(forward(prep, x64, x128))
    assert logits.shape == (BATCH, NUM_CLASSES, T_OUT), logits.shape
    assert bool(jnp.all(jnp.isfinite(logits)))

    ref = jax.block_until_ready(jax.jit(ref_forward)(params, x64, x128))
    np.testing.assert_allclose(np.asarray(logits), np.asarray(ref),
                               rtol=2e-2, atol=2e-2)
    print("KERNEL_OK")
</pallas_src>

<mosaic_0001>
module attributes {stable_mosaic.version = 11 : i64} {
  func.func @_fused_kernel(%arg0: memref<32x256xf32, #tpu.memory_space<vmem>>, %arg1: memref<256x256xf32, #tpu.memory_space<vmem>>, %arg2: memref<1x64xf32, #tpu.memory_space<vmem>>, %arg3: memref<256x128xf32, #tpu.memory_space<vmem>>, %arg4: memref<1x32xf32, #tpu.memory_space<vmem>>, %arg5: memref<32x256xf32, #tpu.memory_space<vmem>>, %arg6: memref<1x256xf32, #tpu.memory_space<vmem>>, %arg7: memref<64x256xf32, #tpu.memory_space<vmem>>, %arg8: memref<64x128xf32, #tpu.memory_space<vmem>>, %arg9: memref<1x128xf32, #tpu.memory_space<vmem>>, %arg10: memref<16x128xf32, #tpu.memory_space<vmem>>, %arg11: memref<16x64xf32, #tpu.memory_space<vmem>>) attributes {dimension_semantics = [], scalar_prefetch = 0 : i64, scratch_operands = 1 : i64, tpu.core_type = #tpu.core_type<tc>} {
    %c0 = arith.constant 0 : index
    %c0_0 = arith.constant 0 : index
    %0 = vector.load %arg0[%c0, %c0_0] : memref<32x256xf32, #tpu.memory_space<vmem>>, vector<32x256xf32>
    %c0_1 = arith.constant 0 : index
    %c0_2 = arith.constant 0 : index
    %1 = vector.load %arg1[%c0_1, %c0_2] : memref<256x256xf32, #tpu.memory_space<vmem>>, vector<256x256xf32>
    %cst = arith.constant dense<0.000000e+00> : vector<32x256xf32>
    %2 = tpu.matmul %0, %1, %cst {dimension_numbers = #tpu.dot_dimension_numbers<[1], [0], [0], [1], [0, 0, 1, 1], [], []>} : vector<32x256xf32>, vector<256x256xf32>, vector<32x256xf32> -> vector<32x256xf32>
    %3 = vector.extract_strided_slice %2 {offsets = [0, 0], sizes = [32, 64], strides = [1, 1]} : vector<32x256xf32> to vector<32x64xf32>
    %4 = vector.extract_strided_slice %2 {offsets = [0, 64], sizes = [32, 64], strides = [1, 1]} : vector<32x256xf32> to vector<32x64xf32>
    %5 = arith.maximumf %3, %4 : vector<32x64xf32>
    %6 = vector.extract_strided_slice %2 {offsets = [0, 128], sizes = [32, 64], strides = [1, 1]} : vector<32x256xf32> to vector<32x64xf32>
    %7 = vector.extract_strided_slice %2 {offsets = [0, 192], sizes = [32, 64], strides = [1, 1]} : vector<32x256xf32> to vector<32x64xf32>
    %8 = arith.maximumf %6, %7 : vector<32x64xf32>
    %9 = arith.maximumf %5, %8 : vector<32x64xf32>
    %c0_3 = arith.constant 0 : index
    %c0_4 = arith.constant 0 : index
    %10 = vector.load %arg2[%c0_3, %c0_4] : memref<1x64xf32, #tpu.memory_space<vmem>>, vector<1x64xf32>
    %11 = vector.broadcast %10 : vector<1x64xf32> to vector<32x64xf32>
    %12 = arith.addf %9, %11 : vector<32x64xf32>
    %cst_5 = arith.constant 0.000000e+00 : f32
    %13 = vector.broadcast %cst_5 : f32 to vector<32x64xf32>
    %14 = arith.maximumf %12, %13 : vector<32x64xf32>
    %cst_6 = arith.constant 0.000000e+00 : f32
    %15 = vector.broadcast %cst_6 : f32 to vector<2x64xf32>
    %16 = vector.extract_strided_slice %14 {offsets = [16, 0], sizes = [14, 64], strides = [1, 1]} : vector<32x64xf32> to vector<14x64xf32>
    %17 = tpu.concatenate %15, %16 in 0 : vector<2x64xf32>, vector<14x64xf32> -> vector<16x64xf32>
    %18 = vector.extract_strided_slice %14 {offsets = [0, 0], sizes = [16, 64], strides = [1, 1]} : vector<32x64xf32> to vector<16x64xf32>
    %19 = vector.extract_strided_slice %14 {offsets = [16, 0], sizes = [16, 64], strides = [1, 1]} : vector<32x64xf32> to vector<16x64xf32>
    %20 = vector.extract_strided_slice %14 {offsets = [2, 0], sizes = [14, 64], strides = [1, 1]} : vector<32x64xf32> to vector<14x64xf32>
    %21 = tpu.concatenate %20, %15 in 0 : vector<14x64xf32>, vector<2x64xf32> -> vector<16x64xf32>
    %22 = tpu.concatenate %17, %18, %19, %21 in 1 : vector<16x64xf32>, vector<16x64xf32>, vector<16x64xf32>, vector<16x64xf32> -> vector<16x256xf32>
    %c0_7 = arith.constant 0 : index
    %c0_8 = arith.constant 0 : index
    %23 = vector.load %arg3[%c0_7, %c0_8] : memref<256x128xf32, #tpu.memory_space<vmem>>, vector<256x128xf32>
    %cst_9 = arith.constant dense<0.000000e+00> : vector<16x128xf32>
    %24 = tpu.matmul %22, %23, %cst_9 {dimension_numbers = #tpu.dot_dimension_numbers<[1], [0], [0], [1], [0, 0, 1, 1], [], []>} : vector<16x256xf32>, vector<256x128xf32>, vector<16x128xf32> -> vector<16x128xf32>
    %25 = vector.extract_strided_slice %24 {offsets = [0, 0], sizes = [16, 32], strides = [1, 1]} : vector<16x128xf32> to vector<16x32xf32>
    %26 = vector.extract_strided_slice %24 {offsets = [0, 32], sizes = [16, 32], strides = [1, 1]} : vector<16x128xf32> to vector<16x32xf32>
    %27 = arith.maximumf %25, %26 : vector<16x32xf32>
    %28 = vector.extract_strided_slice %24 {offsets = [0, 64], sizes = [16, 32], strides = [1, 1]} : vector<16x128xf32> to vector<16x32xf32>
    %29 = vector.extract_strided_slice %24 {offsets = [0, 96], sizes = [16, 32], strides = [1, 1]} : vector<16x128xf32> to vector<16x32xf32>
    %30 = arith.maximumf %28, %29 : vector<16x32xf32>
    %31 = arith.maximumf %27, %30 : vector<16x32xf32>
    %c0_10 = arith.constant 0 : index
    %c0_11 = arith.constant 0 : index
    %32 = vector.load %arg4[%c0_10, %c0_11] : memref<1x32xf32, #tpu.memory_space<vmem>>, vector<1x32xf32>
    %33 = vector.broadcast %32 : vector<1x32xf32> to vector<16x32xf32>
    %34 = arith.addf %31, %33 : vector<16x32xf32>
    %cst_12 = arith.constant 0.000000e+00 : f32
    %35 = vector.broadcast %cst_12 : f32 to vector<16x32xf32>
    %36 = arith.maximumf %34, %35 : vector<16x32xf32>
    %c0_13 = arith.constant 0 : index
    %c0_14 = arith.constant 0 : index
    %37 = vector.load %arg5[%c0_13, %c0_14] : memref<32x256xf32, #tpu.memory_space<vmem>>, vector<32x256xf32>
    %cst_15 = arith.constant dense<0.000000e+00> : vector<16x256xf32>
    %38 = tpu.matmul %36, %37, %cst_15 {dimension_numbers = #tpu.dot_dimension_numbers<[1], [0], [0], [1], [0, 0, 1, 1], [], []>} : vector<16x32xf32>, vector<32x256xf32>, vector<16x256xf32> -> vector<16x256xf32>
    %c0_16 = arith.constant 0 : index
    %c0_17 = arith.constant 0 : index
    %39 = vector.load %arg6[%c0_16, %c0_17] : memref<1x256xf32, #tpu.memory_space<vmem>>, vector<1x256xf32>
    %40 = vector.broadcast %39 : vector<1x256xf32> to vector<16x256xf32>
    %41 = arith.addf %38, %40 : vector<16x256xf32>
    %c0_18 = arith.constant 0 : index
    %c0_19 = arith.constant 0 : index
    %42 = vector.load %arg7[%c0_18, %c0_19] : memref<64x256xf32, #tpu.memory_space<vmem>>, vector<64x256xf32>
    %cst_20 = arith.constant 0.000000e+00 : f32
    %43 = vector.broadcast %cst_20 : f32 to vector<4x64xf32>
    %cst_21 = arith.constant 0.000000e+00 : f32
    %44 = vector.broadcast %cst_21 : f32 to vector<4x64xf32>
    %45 = vector.extract_strided_slice %41 {offsets = [0, 0], sizes = [2, 256], strides = [1, 1]} : vector<16x256xf32> to vector<2x256xf32>
    %46 = vector.extract_strided_slice %41 {offsets = [14, 0], sizes = [2, 256], strides = [1, 1]} : vector<16x256xf32> to vector<2x256xf32>
    %47 = tpu.concatenate %45, %46 in 0 : vector<2x256xf32>, vector<2x256xf32> -> vector<4x256xf32>
    %cst_22 = arith.constant dense<0.000000e+00> : vector<4x256xf32>
    %48 = tpu.matmul %43, %42, %cst_22 {dimension_numbers = #tpu.dot_dimension_numbers<[1], [0], [0], [1], [0, 0, 1, 1], [], []>} : vector<4x64xf32>, vector<64x256xf32>, vector<4x256xf32> -> vector<4x256xf32>
    %49 = arith.addf %47, %48 : vector<4x256xf32>
    %50 = vector.extract_strided_slice %49 {offsets = [0, 0], sizes = [4, 64], strides = [1, 1]} : vector<4x256xf32> to vector<4x64xf32>
    %cst_23 = arith.constant 5.000000e-01 : f32
    %51 = vector.broadcast %cst_23 : f32 to vector<4x64xf32>
    %52 = arith.mulf %51, %50 : vector<4x64xf32>
    %53 = math.tanh %52 : vector<4x64xf32>
    %cst_24 = arith.constant 5.000000e-01 : f32
    %54 = vector.broadcast %cst_24 : f32 to vector<4x64xf32>
    %55 = arith.mulf %54, %53 : vector<4x64xf32>
    %cst_25 = arith.constant 5.000000e-01 : f32
    %56 = vector.broadcast %cst_25 : f32 to vector<4x64xf32>
    %57 = arith.addf %55, %56 : vector<4x64xf32>
    %58 = vector.extract_strided_slice %49 {offsets = [0, 64], sizes = [4, 64], strides = [1, 1]} : vector<4x256xf32> to vector<4x64xf32>
    %cst_26 = arith.constant 5.000000e-01 : f32
    %59 = vector.broadcast %cst_26 : f32 to vector<4x64xf32>
    %60 = arith.mulf %59, %58 : vector<4x64xf32>
    %61 = math.tanh %60 : vector<4x64xf32>
    %cst_27 = arith.constant 5.000000e-01 : f32
    %62 = vector.broadcast %cst_27 : f32 to vector<4x64xf32>
    %63 = arith.mulf %62, %61 : vector<4x64xf32>
    %cst_28 = arith.constant 5.000000e-01 : f32
    %64 = vector.broadcast %cst_28 : f32 to vector<4x64xf32>
    %65 = arith.addf %63, %64 : vector<4x64xf32>
    %66 = vector.extract_strided_slice %49 {offsets = [0, 128], sizes = [4, 64], strides = [1, 1]} : vector<4x256xf32> to vector<4x64xf32>
    %67 = math.tanh %66 : vector<4x64xf32>
    %68 = vector.extract_strided_slice %49 {offsets = [0, 192], sizes = [4, 64], strides = [1, 1]} : vector<4x256xf32> to vector<4x64xf32>
    %cst_29 = arith.constant 5.000000e-01 : f32
    %69 = vector.broadcast %cst_29 : f32 to vector<4x64xf32>
    %70 = arith.mulf %69, %68 : vector<4x64xf32>
    %71 = math.tanh %70 : vector<4x64xf32>
    %cst_30 = arith.constant 5.000000e-01 : f32
    %72 = vector.broadcast %cst_30 : f32 to vector<4x64xf32>
    %73 = arith.mulf %72, %71 : vector<4x64xf32>
    %cst_31 = arith.constant 5.000000e-01 : f32
    %74 = vector.broadcast %cst_31 : f32 to vector<4x64xf32>
    %75 = arith.addf %73, %74 : vector<4x64xf32>
    %76 = arith.mulf %65, %44 : vector<4x64xf32>
    %77 = arith.mulf %57, %67 : vector<4x64xf32>
    %78 = arith.addf %76, %77 : vector<4x64xf32>
    %79 = math.tanh %78 : vector<4x64xf32>
    %80 = arith.mulf %75, %79 : vector<4x64xf32>
    %81 = vector.extract_strided_slice %80 {offsets = [0, 0], sizes = [2, 32], strides = [1, 1]} : vector<4x64xf32> to vector<2x32xf32>
    %c0_32 = arith.constant 0 : index
    %c0_33 = arith.constant 0 : index
    %82 = vector.load %arg11[%c0_32, %c0_33] : memref<16x64xf32, #tpu.memory_space<vmem>>, vector<2x32xf32>
    tpu.vector_store %arg11[%c0_32, %c0_33], %81 {strides = array<i32>} : memref<16x64xf32, #tpu.memory_space<vmem>>, vector<2x32xf32>,
    %83 = vector.extract_strided_slice %80 {offsets = [2, 32], sizes = [2, 32], strides = [1, 1]} : vector<4x64xf32> to vector<2x32xf32>
    %c14 = arith.constant 14 : index
    %c32 = arith.constant 32 : index
    %84 = vector.load %arg11[%c14, %c32] : memref<16x64xf32, #tpu.memory_space<vmem>>, vector<2x32xf32>
    tpu.vector_store %arg11[%c14, %c32], %83 {strides = array<i32>} : memref<16x64xf32, #tpu.memory_space<vmem>>, vector<2x32xf32>,
    %85 = vector.extract_strided_slice %41 {offsets = [2, 0], sizes = [2, 256], strides = [1, 1]} : vector<16x256xf32> to vector<2x256xf32>
    %86 = vector.extract_strided_slice %41 {offsets = [12, 0], sizes = [2, 256], strides = [1, 1]} : vector<16x256xf32> to vector<2x256xf32>
    %87 = tpu.concatenate %85, %86 in 0 : vector<2x256xf32>, vector<2x256xf32> -> vector<4x256xf32>
    %cst_34 = arith.constant dense<0.000000e+00> : vector<4x256xf32>
    %88 = tpu.matmul %80, %42, %cst_34 {dimension_numbers = #tpu.dot_dimension_numbers<[1], [0], [0], [1], [0, 0, 1, 1], [], []>} : vector<4x64xf32>, vector<64x256xf32>, vector<4x256xf32> -> vector<4x256xf32>
    %89 = arith.addf %87, %88 : vector<4x256xf32>
    %90 = vector.extract_strided_slice %89 {offsets = [0, 0], sizes = [4, 64], strides = [1, 1]} : vector<4x256xf32> to vector<4x64xf32>
    %cst_35 = arith.constant 5.000000e-01 : f32
    %91 = vector.broadcast %cst_35 : f32 to vector<4x64xf32>
    %92 = arith.mulf %91, %90 : vector<4x64xf32>
    %93 = math.tanh %92 : vector<4x64xf32>
    %cst_36 = arith.constant 5.000000e-01 : f32
    %94 = vector.broadcast %cst_36 : f32 to vector<4x64xf32>
    %95 = arith.mulf %94, %93 : vector<4x64xf32>
    %cst_37 = arith.constant 5.000000e-01 : f32
    %96 = vector.broadcast %cst_37 : f32 to vector<4x64xf32>
    %97 = arith.addf %95, %96 : vector<4x64xf32>
    %98 = vector.extract_strided_slice %89 {offsets = [0, 64], sizes = [4, 64], strides = [1, 1]} : vector<4x256xf32> to vector<4x64xf32>
    %cst_38 = arith.constant 5.000000e-01 : f32
    %99 = vector.broadcast %cst_38 : f32 to vector<4x64xf32>
    %100 = arith.mulf %99, %98 : vector<4x64xf32>
    %101 = math.tanh %100 : vector<4x64xf32>
    %cst_39 = arith.constant 5.000000e-01 : f32
    %102 = vector.broadcast %cst_39 : f32 to vector<4x64xf32>
    %103 = arith.mulf %102, %101 : vector<4x64xf32>
    %cst_40 = arith.constant 5.000000e-01 : f32
    %104 = vector.broadcast %cst_40 : f32 to vector<4x64xf32>
    %105 = arith.addf %103, %104 : vector<4x64xf32>
    %106 = vector.extract_strided_slice %89 {offsets = [0, 128], sizes = [4, 64], strides = [1, 1]} : vector<4x256xf32> to vector<4x64xf32>
    %107 = math.tanh %106 : vector<4x64xf32>
    %108 = vector.extract_strided_slice %89 {offsets = [0, 192], sizes = [4, 64], strides = [1, 1]} : vector<4x256xf32> to vector<4x64xf32>
    %cst_41 = arith.constant 5.000000e-01 : f32
    %109 = vector.broadcast %cst_41 : f32 to vector<4x64xf32>
    %110 = arith.mulf %109, %108 : vector<4x64xf32>
    %111 = math.tanh %110 : vector<4x64xf32>
    %cst_42 = arith.constant 5.000000e-01 : f32
    %112 = vector.broadcast %cst_42 : f32 to vector<4x64xf32>
    %113 = arith.mulf %112, %111 : vector<4x64xf32>
    %cst_43 = arith.constant 5.000000e-01 : f32
    %114 = vector.broadcast %cst_43 : f32 to vector<4x64xf32>
    %115 = arith.addf %113, %114 : vector<4x64xf32>
    %116 = arith.mulf %105, %78 : vector<4x64xf32>
    %117 = arith.mulf %97, %107 : vector<4x64xf32>
    %118 = arith.addf %116, %117 : vector<4x64xf32>
    %119 = math.tanh %118 : vector<4x64xf32>
    %120 = arith.mulf %115, %119 : vector<4x64xf32>
    %121 = vector.extract_strided_slice %120 {offsets = [0, 0], sizes = [2, 32], strides = [1, 1]} : vector<4x64xf32> to vector<2x32xf32>
    %c2 = arith.constant 2 : index
    %c0_44 = arith.constant 0 : index
    %122 = vector.load %arg11[%c2, %c0_44] : memref<16x64xf32, #tpu.memory_space<vmem>>, vector<2x32xf32>
    tpu.vector_store %arg11[%c2, %c0_44], %121 {strides = array<i32>} : memref<16x64xf32, #tpu.memory_space<vmem>>, vector<2x32xf32>,
    %123 = vector.extract_strided_slice %120 {offsets = [2, 32], sizes = [2, 32], strides = [1, 1]} : vector<4x64xf32> to vector<2x32xf32>
    %c12 = arith.constant 12 : index
    %c32_45 = arith.constant 32 : index
    %124 = vector.load %arg11[%c12, %c32_45] : memref<16x64xf32, #tpu.memory_space<vmem>>, vector<2x32xf32>
    tpu.vector_store %arg11[%c12, %c32_45], %123 {strides = array<i32>} : memref<16x64xf32, #tpu.memory_space<vmem>>, vector<2x32xf32>,
    %125 = vector.extract_strided_slice %41 {offsets = [4, 0], sizes = [2, 256], strides = [1, 1]} : vector<16x256xf32> to vector<2x256xf32>
    %126 = vector.extract_strided_slice %41 {offsets = [10, 0], sizes = [2, 256], strides = [1, 1]} : vector<16x256xf32> to vector<2x256xf32>
    %127 = tpu.concatenate %125, %126 in 0 : vector<2x256xf32>, vector<2x256xf32> -> vector<4x256xf32>
    %cst_46 = arith.constant dense<0.000000e+00> : vector<4x256xf32>
    %128 = tpu.matmul %120, %42, %cst_46 {dimension_numbers = #tpu.dot_dimension_numbers<[1], [0], [0], [1], [0, 0, 1, 1], [], []>} : vector<4x64xf32>, vector<64x256xf32>, vector<4x256xf32> -> vector<4x256xf32>
    %129 = arith.addf %127, %128 : vector<4x256xf32>
    %130 = vector.extract_strided_slice %129 {offsets = [0, 0], sizes = [4, 64], strides = [1, 1]} : vector<4x256xf32> to vector<4x64xf32>
    %cst_47 = arith.constant 5.000000e-01 : f32
    %131 = vector.broadcast %cst_47 : f32 to vector<4x64xf32>
    %132 = arith.mulf %131, %130 : vector<4x64xf32>
    %133 = math.tanh %132 : vector<4x64xf32>
    %cst_48 = arith.constant 5.000000e-01 : f32
    %134 = vector.broadcast %cst_48 : f32 to vector<4x64xf32>
    %135 = arith.mulf %134, %133 : vector<4x64xf32>
    %cst_49 = arith.constant 5.000000e-01 : f32
    %136 = vector.broadcast %cst_49 : f32 to vector<4x64xf32>
    %137 = arith.addf %135, %136 : vector<4x64xf32>
    %138 = vector.extract_strided_slice %129 {offsets = [0, 64], sizes = [4, 64], strides = [1, 1]} : vector<4x256xf32> to vector<4x64xf32>
    %cst_50 = arith.constant 5.000000e-01 : f32
    %139 = vector.broadcast %cst_50 : f32 to vector<4x64xf32>
    %140 = arith.mulf %139, %138 : vector<4x64xf32>
    %141 = math.tanh %140 : vector<4x64xf32>
    %cst_51 = arith.constant 5.000000e-01 : f32
    %142 = vector.broadcast %cst_51 : f32 to vector<4x64xf32>
    %143 = arith.mulf %142, %141 : vector<4x64xf32>
    %cst_52 = arith.constant 5.000000e-01 : f32
    %144 = vector.broadcast %cst_52 : f32 to vector<4x64xf32>
    %145 = arith.addf %143, %144 : vector<4x64xf32>
    %146 = vector.extract_strided_slice %129 {offsets = [0, 128], sizes = [4, 64], strides = [1, 1]} : vector<4x256xf32> to vector<4x64xf32>
    %147 = math.tanh %146 : vector<4x64xf32>
    %148 = vector.extract_strided_slice %129 {offsets = [0, 192], sizes = [4, 64], strides = [1, 1]} : vector<4x256xf32> to vector<4x64xf32>
    %cst_53 = arith.constant 5.000000e-01 : f32
    %149 = vector.broadcast %cst_53 : f32 to vector<4x64xf32>
    %150 = arith.mulf %149, %148 : vector<4x64xf32>
    %151 = math.tanh %150 : vector<4x64xf32>
    %cst_54 = arith.constant 5.000000e-01 : f32
    %152 = vector.broadcast %cst_54 : f32 to vector<4x64xf32>
    %153 = arith.mulf %152, %151 : vector<4x64xf32>
    %cst_55 = arith.constant 5.000000e-01 : f32
    %154 = vector.broadcast %cst_55 : f32 to vector<4x64xf32>
    %155 = arith.addf %153, %154 : vector<4x64xf32>
    %156 = arith.mulf %145, %118 : vector<4x64xf32>
    %157 = arith.mulf %137, %147 : vector<4x64xf32>
    %158 = arith.addf %156, %157 : vector<4x64xf32>
    %159 = math.tanh %158 : vector<4x64xf32>
    %160 = arith.mulf %155, %159 : vector<4x64xf32>
    %161 = vector.extract_strided_slice %160 {offsets = [0, 0], sizes = [2, 32], strides = [1, 1]} : vector<4x64xf32> to vector<2x32xf32>
    %c4 = arith.constant 4 : index
    %c0_56 = arith.constant 0 : index
    %162 = vector.load %arg11[%c4, %c0_56] : memref<16x64xf32, #tpu.memory_space<vmem>>, vector<2x32xf32>
    tpu.vector_store %arg11[%c4, %c0_56], %161 {strides = array<i32>} : memref<16x64xf32, #tpu.memory_space<vmem>>, vector<2x32xf32>,
    %163 = vector.extract_strided_slice %160 {offsets = [2, 32], sizes = [2, 32], strides = [1, 1]} : vector<4x64xf32> to vector<2x32xf32>
    %c10 = arith.constant 10 : index
    %c32_57 = arith.constant 32 : index
    %164 = vector.load %arg11[%c10, %c32_57] : memref<16x64xf32, #tpu.memory_space<vmem>>, vector<2x32xf32>
    tpu.vector_store %arg11[%c10, %c32_57], %163 {strides = array<i32>} : memref<16x64xf32, #tpu.memory_space<vmem>>, vector<2x32xf32>,
    %165 = vector.extract_strided_slice %41 {offsets = [6, 0], sizes = [2, 256], strides = [1, 1]} : vector<16x256xf32> to vector<2x256xf32>
    %166 = vector.extract_strided_slice %41 {offsets = [8, 0], sizes = [2, 256], strides = [1, 1]} : vector<16x256xf32> to vector<2x256xf32>
    %167 = tpu.concatenate %165, %166 in 0 : vector<2x256xf32>, vector<2x256xf32> -> vector<4x256xf32>
    %cst_58 = arith.constant dense<0.000000e+00> : vector<4x256xf32>
    %168 = tpu.matmul %160, %42, %cst_58 {dimension_numbers = #tpu.dot_dimension_numbers<[1], [0], [0], [1], [0, 0, 1, 1], [], []>} : vector<4x64xf32>, vector<64x256xf32>, vector<4x256xf32> -> vector<4x256xf32>
    %169 = arith.addf %167, %168 : vector<4x256xf32>
    %170 = vector.extract_strided_slice %169 {offsets = [0, 0], sizes = [4, 64], strides = [1, 1]} : vector<4x256xf32> to vector<4x64xf32>
    %cst_59 = arith.constant 5.000000e-01 : f32
    %171 = vector.broadcast %cst_59 : f32 to vector<4x64xf32>
    %172 = arith.mulf %171, %170 : vector<4x64xf32>
    %173 = math.tanh %172 : vector<4x64xf32>
    %cst_60 = arith.constant 5.000000e-01 : f32
    %174 = vector.broadcast %cst_60 : f32 to vector<4x64xf32>
    %175 = arith.mulf %174, %173 : vector<4x64xf32>
    %cst_61 = arith.constant 5.000000e-01 : f32
    %176 = vector.broadcast %cst_61 : f32 to vector<4x64xf32>
    %177 = arith.addf %175, %176 : vector<4x64xf32>
    %178 = vector.extract_strided_slice %169 {offsets = [0, 64], sizes = [4, 64], strides = [1, 1]} : vector<4x256xf32> to vector<4x64xf32>
    %cst_62 = arith.constant 5.000000e-01 : f32
    %179 = vector.broadcast %cst_62 : f32 to vector<4x64xf32>
    %180 = arith.mulf %179, %178 : vector<4x64xf32>
    %181 = math.tanh %180 : vector<4x64xf32>
    %cst_63 = arith.constant 5.000000e-01 : f32
    %182 = vector.broadcast %cst_63 : f32 to vector<4x64xf32>
    %183 = arith.mulf %182, %181 : vector<4x64xf32>
    %cst_64 = arith.constant 5.000000e-01 : f32
    %184 = vector.broadcast %cst_64 : f32 to vector<4x64xf32>
    %185 = arith.addf %183, %184 : vector<4x64xf32>
    %186 = vector.extract_strided_slice %169 {offsets = [0, 128], sizes = [4, 64], strides = [1, 1]} : vector<4x256xf32> to vector<4x64xf32>
    %187 = math.tanh %186 : vector<4x64xf32>
    %188 = vector.extract_strided_slice %169 {offsets = [0, 192], sizes = [4, 64], strides = [1, 1]} : vector<4x256xf32> to vector<4x64xf32>
    %cst_65 = arith.constant 5.000000e-01 : f32
    %189 = vector.broadcast %cst_65 : f32 to vector<4x64xf32>
    %190 = arith.mulf %189, %188 : vector<4x64xf32>
    %191 = math.tanh %190 : vector<4x64xf32>
    %cst_66 = arith.constant 5.000000e-01 : f32
    %192 = vector.broadcast %cst_66 : f32 to vector<4x64xf32>
    %193 = arith.mulf %192, %191 : vector<4x64xf32>
    %cst_67 = arith.constant 5.000000e-01 : f32
    %194 = vector.broadcast %cst_67 : f32 to vector<4x64xf32>
    %195 = arith.addf %193, %194 : vector<4x64xf32>
    %196 = arith.mulf %185, %158 : vector<4x64xf32>
    %197 = arith.mulf %177, %187 : vector<4x64xf32>
    %198 = arith.addf %196, %197 : vector<4x64xf32>
    %199 = math.tanh %198 : vector<4x64xf32>
    %200 = arith.mulf %195, %199 : vector<4x64xf32>
    %201 = vector.extract_strided_slice %200 {offsets = [0, 0], sizes = [2, 32], strides = [1, 1]} : vector<4x64xf32> to vector<2x32xf32>
    %c6 = arith.constant 6 : index
    %c0_68 = arith.constant 0 : index
    %202 = vector.load %arg11[%c6, %c0_68] : memref<16x64xf32, #tpu.memory_space<vmem>>, vector<2x32xf32>
    tpu.vector_store %arg11[%c6, %c0_68], %201 {strides = array<i32>} : memref<16x64xf32, #tpu.memory_space<vmem>>, vector<2x32xf32>,
    %203 = vector.extract_strided_slice %200 {offsets = [2, 32], sizes = [2, 32], strides = [1, 1]} : vector<4x64xf32> to vector<2x32xf32>
    %c8 = arith.constant 8 : index
    %c32_69 = arith.constant 32 : index
    %204 = vector.load %arg11[%c8, %c32_69] : memref<16x64xf32, #tpu.memory_space<vmem>>, vector<2x32xf32>
    tpu.vector_store %arg11[%c8, %c32_69], %203 {strides = array<i32>} : memref<16x64xf32, #tpu.memory_space<vmem>>, vector<2x32xf32>,
    %205 = vector.extract_strided_slice %41 {offsets = [8, 0], sizes = [2, 256], strides = [1, 1]} : vector<16x256xf32> to vector<2x256xf32>
    %206 = vector.extract_strided_slice %41 {offsets = [6, 0], sizes = [2, 256], strides = [1, 1]} : vector<16x256xf32> to vector<2x256xf32>
    %207 = tpu.concatenate %205, %206 in 0 : vector<2x256xf32>, vector<2x256xf32> -> vector<4x256xf32>
    %cst_70 = arith.constant dense<0.000000e+00> : vector<4x256xf32>
    %208 = tpu.matmul %200, %42, %cst_70 {dimension_numbers = #tpu.dot_dimension_numbers<[1], [0], [0], [1], [0, 0, 1, 1], [], []>} : vector<4x64xf32>, vector<64x256xf32>, vector<4x256xf32> -> vector<4x256xf32>
    %209 = arith.addf %207, %208 : vector<4x256xf32>
    %210 = vector.extract_strided_slice %209 {offsets = [0, 0], sizes = [4, 64], strides = [1, 1]} : vector<4x256xf32> to vector<4x64xf32>
    %cst_71 = arith.constant 5.000000e-01 : f32
    %211 = vector.broadcast %cst_71 : f32 to vector<4x64xf32>
    %212 = arith.mulf %211, %210 : vector<4x64xf32>
    %213 = math.tanh %212 : vector<4x64xf32>
    %cst_72 = arith.constant 5.000000e-01 : f32
    %214 = vector.broadcast %cst_72 : f32 to vector<4x64xf32>
    %215 = arith.mulf %214, %213 : vector<4x64xf32>
    %cst_73 = arith.constant 5.000000e-01 : f32
    %216 = vector.broadcast %cst_73 : f32 to vector<4x64xf32>
    %217 = arith.addf %215, %216 : vector<4x64xf32>
    %218 = vector.extract_strided_slice %209 {offsets = [0, 64], sizes = [4, 64], strides = [1, 1]} : vector<4x256xf32> to vector<4x64xf32>
    %cst_74 = arith.constant 5.000000e-01 : f32
    %219 = vector.broadcast %cst_74 : f32 to vector<4x64xf32>
    %220 = arith.mulf %219, %218 : vector<4x64xf32>
    %221 = math.tanh %220 : vector<4x64xf32>
    %cst_75 = arith.constant 5.000000e-01 : f32
    %222 = vector.broadcast %cst_75 : f32 to vector<4x64xf32>
    %223 = arith.mulf %222, %221 : vector<4x64xf32>
    %cst_76 = arith.constant 5.000000e-01 : f32
    %224 = vector.broadcast %cst_76 : f32 to vector<4x64xf32>
    %225 = arith.addf %223, %224 : vector<4x64xf32>
    %226 = vector.extract_strided_slice %209 {offsets = [0, 128], sizes = [4, 64], strides = [1, 1]} : vector<4x256xf32> to vector<4x64xf32>
    %227 = math.tanh %226 : vector<4x64xf32>
    %228 = vector.extract_strided_slice %209 {offsets = [0, 192], sizes = [4, 64], strides = [1, 1]} : vector<4x256xf32> to vector<4x64xf32>
    %cst_77 = arith.constant 5.000000e-01 : f32
    %229 = vector.broadcast %cst_77 : f32 to vector<4x64xf32>
    %230 = arith.mulf %229, %228 : vector<4x64xf32>
    %231 = math.tanh %230 : vector<4x64xf32>
    %cst_78 = arith.constant 5.000000e-01 : f32
    %232 = vector.broadcast %cst_78 : f32 to vector<4x64xf32>
    %233 = arith.mulf %232, %231 : vector<4x64xf32>
    %cst_79 = arith.constant 5.000000e-01 : f32
    %234 = vector.broadcast %cst_79 : f32 to vector<4x64xf32>
    %235 = arith.addf %233, %234 : vector<4x64xf32>
    %236 = arith.mulf %225, %198 : vector<4x64xf32>
    %237 = arith.mulf %217, %227 : vector<4x64xf32>
    %238 = arith.addf %236, %237 : vector<4x64xf32>
    %239 = math.tanh %238 : vector<4x64xf32>
    %240 = arith.mulf %235, %239 : vector<4x64xf32>
    %241 = vector.extract_strided_slice %240 {offsets = [0, 0], sizes = [2, 32], strides = [1, 1]} : vector<4x64xf32> to vector<2x32xf32>
    %c8_80 = arith.constant 8 : index
    %c0_81 = arith.constant 0 : index
    %242 = vector.load %arg11[%c8_80, %c0_81] : memref<16x64xf32, #tpu.memory_space<vmem>>, vector<2x32xf32>
    tpu.vector_store %arg11[%c8_80, %c0_81], %241 {strides = array<i32>} : memref<16x64xf32, #tpu.memory_space<vmem>>, vector<2x32xf32>,
    %243 = vector.extract_strided_slice %240 {offsets = [2, 32], sizes = [2, 32], strides = [1, 1]} : vector<4x64xf32> to vector<2x32xf32>
    %c6_82 = arith.constant 6 : index
    %c32_83 = arith.constant 32 : index
    %244 = vector.load %arg11[%c6_82, %c32_83] : memref<16x64xf32, #tpu.memory_space<vmem>>, vector<2x32xf32>
    tpu.vector_store %arg11[%c6_82, %c32_83], %243 {strides = array<i32>} : memref<16x64xf32, #tpu.memory_space<vmem>>, vector<2x32xf32>,
    %245 = vector.extract_strided_slice %41 {offsets = [10, 0], sizes = [2, 256], strides = [1, 1]} : vector<16x256xf32> to vector<2x256xf32>
    %246 = vector.extract_strided_slice %41 {offsets = [4, 0], sizes = [2, 256], strides = [1, 1]} : vector<16x256xf32> to vector<2x256xf32>
    %247 = tpu.concatenate %245, %246 in 0 : vector<2x256xf32>, vector<2x256xf32> -> vector<4x256xf32>
    %cst_84 = arith.constant dense<0.000000e+00> : vector<4x256xf32>
    %248 = tpu.matmul %240, %42, %cst_84 {dimension_numbers = #tpu.dot_dimension_numbers<[1], [0], [0], [1], [0, 0, 1, 1], [], []>} : vector<4x64xf32>, vector<64x256xf32>, vector<4x256xf32> -> vector<4x256xf32>
    %249 = arith.addf %247, %248 : vector<4x256xf32>
    %250 = vector.extract_strided_slice %249 {offsets = [0, 0], sizes = [4, 64], strides = [1, 1]} : vector<4x256xf32> to vector<4x64xf32>
    %cst_85 = arith.constant 5.000000e-01 : f32
    %251 = vector.broadcast %cst_85 : f32 to vector<4x64xf32>
    %252 = arith.mulf %251, %250 : vector<4x64xf32>
    %253 = math.tanh %252 : vector<4x64xf32>
    %cst_86 = arith.constant 5.000000e-01 : f32
    %254 = vector.broadcast %cst_86 : f32 to vector<4x64xf32>
    %255 = arith.mulf %254, %253 : vector<4x64xf32>
    %cst_87 = arith.constant 5.000000e-01 : f32
    %256 = vector.broadcast %cst_87 : f32 to vector<4x64xf32>
    %257 = arith.addf %255, %256 : vector<4x64xf32>
    %258 = vector.extract_strided_slice %249 {offsets = [0, 64], sizes = [4, 64], strides = [1, 1]} : vector<4x256xf32> to vector<4x64xf32>
    %cst_88 = arith.constant 5.000000e-01 : f32
    %259 = vector.broadcast %cst_88 : f32 to vector<4x64xf32>
    %260 = arith.mulf %259, %258 : vector<4x64xf32>
    %261 = math.tanh %260 : vector<4x64xf32>
    %cst_89 = arith.constant 5.000000e-01 : f32
    %262 = vector.broadcast %cst_89 : f32 to vector<4x64xf32>
    %263 = arith.mulf %262, %261 : vector<4x64xf32>
    %cst_90 = arith.constant 5.000000e-01 : f32
    %264 = vector.broadcast %cst_90 : f32 to vector<4x64xf32>
    %265 = arith.addf %263, %264 : vector<4x64xf32>
    %266 = vector.extract_strided_slice %249 {offsets = [0, 128], sizes = [4, 64], strides = [1, 1]} : vector<4x256xf32> to vector<4x64xf32>
    %267 = math.tanh %266 : vector<4x64xf32>
    %268 = vector.extract_strided_slice %249 {offsets = [0, 192], sizes = [4, 64], strides = [1, 1]} : vector<4x256xf32> to vector<4x64xf32>
    %cst_91 = arith.constant 5.000000e-01 : f32
    %269 = vector.broadcast %cst_91 : f32 to vector<4x64xf32>
    %270 = arith.mulf %269, %268 : vector<4x64xf32>
    %271 = math.tanh %270 : vector<4x64xf32>
    %cst_92 = arith.constant 5.000000e-01 : f32
    %272 = vector.broadcast %cst_92 : f32 to vector<4x64xf32>
    %273 = arith.mulf %272, %271 : vector<4x64xf32>
    %cst_93 = arith.constant 5.000000e-01 : f32
    %274 = vector.broadcast %cst_93 : f32 to vector<4x64xf32>
    %275 = arith.addf %273, %274 : vector<4x64xf32>
    %276 = arith.mulf %265, %238 : vector<4x64xf32>
    %277 = arith.mulf %257, %267 : vector<4x64xf32>
    %278 = arith.addf %276, %277 : vector<4x64xf32>
    %279 = math.tanh %278 : vector<4x64xf32>
    %280 = arith.mulf %275, %279 : vector<4x64xf32>
    %281 = vector.extract_strided_slice %280 {offsets = [0, 0], sizes = [2, 32], strides = [1, 1]} : vector<4x64xf32> to vector<2x32xf32>
    %c10_94 = arith.constant 10 : index
    %c0_95 = arith.constant 0 : index
    %282 = vector.load %arg11[%c10_94, %c0_95] : memref<16x64xf32, #tpu.memory_space<vmem>>, vector<2x32xf32>
    tpu.vector_store %arg11[%c10_94, %c0_95], %281 {strides = array<i32>} : memref<16x64xf32, #tpu.memory_space<vmem>>, vector<2x32xf32>,
    %283 = vector.extract_strided_slice %280 {offsets = [2, 32], sizes = [2, 32], strides = [1, 1]} : vector<4x64xf32> to vector<2x32xf32>
    %c4_96 = arith.constant 4 : index
    %c32_97 = arith.constant 32 : index
    %284 = vector.load %arg11[%c4_96, %c32_97] : memref<16x64xf32, #tpu.memory_space<vmem>>, vector<2x32xf32>
    tpu.vector_store %arg11[%c4_96, %c32_97], %283 {strides = array<i32>} : memref<16x64xf32, #tpu.memory_space<vmem>>, vector<2x32xf32>,
    %285 = vector.extract_strided_slice %41 {offsets = [12, 0], sizes = [2, 256], strides = [1, 1]} : vector<16x256xf32> to vector<2x256xf32>
    %286 = vector.extract_strided_slice %41 {offsets = [2, 0], sizes = [2, 256], strides = [1, 1]} : vector<16x256xf32> to vector<2x256xf32>
    %287 = tpu.concatenate %285, %286 in 0 : vector<2x256xf32>, vector<2x256xf32> -> vector<4x256xf32>
    %cst_98 = arith.constant dense<0.000000e+00> : vector<4x256xf32>
    %288 = tpu.matmul %280, %42, %cst_98 {dimension_numbers = #tpu.dot_dimension_numbers<[1], [0], [0], [1], [0, 0, 1, 1], [], []>} : vector<4x64xf32>, vector<64x256xf32>, vector<4x256xf32> -> vector<4x256xf32>
    %289 = arith.addf %287, %288 : vector<4x256xf32>
    %290 = vector.extract_strided_slice %289 {offsets = [0, 0], sizes = [4, 64], strides = [1, 1]} : vector<4x256xf32> to vector<4x64xf32>
    %cst_99 = arith.constant 5.000000e-01 : f32
    %291 = vector.broadcast %cst_99 : f32 to vector<4x64xf32>
    %292 = arith.mulf %291, %290 : vector<4x64xf32>
    %293 = math.tanh %292 : vector<4x64xf32>
    %cst_100 = arith.constant 5.000000e-01 : f32
    %294 = vector.broadcast %cst_100 : f32 to vector<4x64xf32>
    %295 = arith.mulf %294, %293 : vector<4x64xf32>
    %cst_101 = arith.constant 5.000000e-01 : f32
    %296 = vector.broadcast %cst_101 : f32 to vector<4x64xf32>
    %297 = arith.addf %295, %296 : vector<4x64xf32>
    %298 = vector.extract_strided_slice %289 {offsets = [0, 64], sizes = [4, 64], strides = [1, 1]} : vector<4x256xf32> to vector<4x64xf32>
    %cst_102 = arith.constant 5.000000e-01 : f32
    %299 = vector.broadcast %cst_102 : f32 to vector<4x64xf32>
    %300 = arith.mulf %299, %298 : vector<4x64xf32>
    %301 = math.tanh %300 : vector<4x64xf32>
    %cst_103 = arith.constant 5.000000e-01 : f32
    %302 = vector.broadcast %cst_103 : f32 to vector<4x64xf32>
    %303 = arith.mulf %302, %301 : vector<4x64xf32>
    %cst_104 = arith.constant 5.000000e-01 : f32
    %304 = vector.broadcast %cst_104 : f32 to vector<4x64xf32>
    %305 = arith.addf %303, %304 : vector<4x64xf32>
    %306 = vector.extract_strided_slice %289 {offsets = [0, 128], sizes = [4, 64], strides = [1, 1]} : vector<4x256xf32> to vector<4x64xf32>
    %307 = math.tanh %306 : vector<4x64xf32>
    %308 = vector.extract_strided_slice %289 {offsets = [0, 192], sizes = [4, 64], strides = [1, 1]} : vector<4x256xf32> to vector<4x64xf32>
    %cst_105 = arith.constant 5.000000e-01 : f32
    %309 = vector.broadcast %cst_105 : f32 to vector<4x64xf32>
    %310 = arith.mulf %309, %308 : vector<4x64xf32>
    %311 = math.tanh %310 : vector<4x64xf32>
    %cst_106 = arith.constant 5.000000e-01 : f32
    %312 = vector.broadcast %cst_106 : f32 to vector<4x64xf32>
    %313 = arith.mulf %312, %311 : vector<4x64xf32>
    %cst_107 = arith.constant 5.000000e-01 : f32
    %314 = vector.broadcast %cst_107 : f32 to vector<4x64xf32>
    %315 = arith.addf %313, %314 : vector<4x64xf32>
    %316 = arith.mulf %305, %278 : vector<4x64xf32>
    %317 = arith.mulf %297, %307 : vector<4x64xf32>
    %318 = arith.addf %316, %317 : vector<4x64xf32>
    %319 = math.tanh %318 : vector<4x64xf32>
    %320 = arith.mulf %315, %319 : vector<4x64xf32>
    %321 = vector.extract_strided_slice %320 {offsets = [0, 0], sizes = [2, 32], strides = [1, 1]} : vector<4x64xf32> to vector<2x32xf32>
    %c12_108 = arith.constant 12 : index
    %c0_109 = arith.constant 0 : index
    %322 = vector.load %arg11[%c12_108, %c0_109] : memref<16x64xf32, #tpu.memory_space<vmem>>, vector<2x32xf32>
    tpu.vector_store %arg11[%c12_108, %c0_109], %321 {strides = array<i32>} : memref<16x64xf32, #tpu.memory_space<vmem>>, vector<2x32xf32>,
    %323 = vector.extract_strided_slice %320 {offsets = [2, 32], sizes = [2, 32], strides = [1, 1]} : vector<4x64xf32> to vector<2x32xf32>
    %c2_110 = arith.constant 2 : index
    %c32_111 = arith.constant 32 : index
    %324 = vector.load %arg11[%c2_110, %c32_111] : memref<16x64xf32, #tpu.memory_space<vmem>>, vector<2x32xf32>
    tpu.vector_store %arg11[%c2_110, %c32_111], %323 {strides = array<i32>} : memref<16x64xf32, #tpu.memory_space<vmem>>, vector<2x32xf32>,
    %325 = vector.extract_strided_slice %41 {offsets = [14, 0], sizes = [2, 256], strides = [1, 1]} : vector<16x256xf32> to vector<2x256xf32>
    %326 = vector.extract_strided_slice %41 {offsets = [0, 0], sizes = [2, 256], strides = [1, 1]} : vector<16x256xf32> to vector<2x256xf32>
    %327 = tpu.concatenate %325, %326 in 0 : vector<2x256xf32>, vector<2x256xf32> -> vector<4x256xf32>
    %cst_112 = arith.constant dense<0.000000e+00> : vector<4x256xf32>
    %328 = tpu.matmul %320, %42, %cst_112 {dimension_numbers = #tpu.dot_dimension_numbers<[1], [0], [0], [1], [0, 0, 1, 1], [], []>} : vector<4x64xf32>, vector<64x256xf32>, vector<4x256xf32> -> vector<4x256xf32>
    %329 = arith.addf %327, %328 : vector<4x256xf32>
    %330 = vector.extract_strided_slice %329 {offsets = [0, 0], sizes = [4, 64], strides = [1, 1]} : vector<4x256xf32> to vector<4x64xf32>
    %cst_113 = arith.constant 5.000000e-01 : f32
    %331 = vector.broadcast %cst_113 : f32 to vector<4x64xf32>
    %332 = arith.mulf %331, %330 : vector<4x64xf32>
    %333 = math.tanh %332 : vector<4x64xf32>
    %cst_114 = arith.constant 5.000000e-01 : f32
    %334 = vector.broadcast %cst_114 : f32 to vector<4x64xf32>
    %335 = arith.mulf %334, %333 : vector<4x64xf32>
    %cst_115 = arith.constant 5.000000e-01 : f32
    %336 = vector.broadcast %cst_115 : f32 to vector<4x64xf32>
    %337 = arith.addf %335, %336 : vector<4x64xf32>
    %338 = vector.extract_strided_slice %329 {offsets = [0, 64], sizes = [4, 64], strides = [1, 1]} : vector<4x256xf32> to vector<4x64xf32>
    %cst_116 = arith.constant 5.000000e-01 : f32
    %339 = vector.broadcast %cst_116 : f32 to vector<4x64xf32>
    %340 = arith.mulf %339, %338 : vector<4x64xf32>
    %341 = math.tanh %340 : vector<4x64xf32>
    %cst_117 = arith.constant 5.000000e-01 : f32
    %342 = vector.broadcast %cst_117 : f32 to vector<4x64xf32>
    %343 = arith.mulf %342, %341 : vector<4x64xf32>
    %cst_118 = arith.constant 5.000000e-01 : f32
    %344 = vector.broadcast %cst_118 : f32 to vector<4x64xf32>
    %345 = arith.addf %343, %344 : vector<4x64xf32>
    %346 = vector.extract_strided_slice %329 {offsets = [0, 128], sizes = [4, 64], strides = [1, 1]} : vector<4x256xf32> to vector<4x64xf32>
    %347 = math.tanh %346 : vector<4x64xf32>
    %348 = vector.extract_strided_slice %329 {offsets = [0, 192], sizes = [4, 64], strides = [1, 1]} : vector<4x256xf32> to vector<4x64xf32>
    %cst_119 = arith.constant 5.000000e-01 : f32
    %349 = vector.broadcast %cst_119 : f32 to vector<4x64xf32>
    %350 = arith.mulf %349, %348 : vector<4x64xf32>
    %351 = math.tanh %350 : vector<4x64xf32>
    %cst_120 = arith.constant 5.000000e-01 : f32
    %352 = vector.broadcast %cst_120 : f32 to vector<4x64xf32>
    %353 = arith.mulf %352, %351 : vector<4x64xf32>
    %cst_121 = arith.constant 5.000000e-01 : f32
    %354 = vector.broadcast %cst_121 : f32 to vector<4x64xf32>
    %355 = arith.addf %353, %354 : vector<4x64xf32>
    %356 = arith.mulf %345, %318 : vector<4x64xf32>
    %357 = arith.mulf %337, %347 : vector<4x64xf32>
    %358 = arith.addf %356, %357 : vector<4x64xf32>
    %359 = math.tanh %358 : vector<4x64xf32>
    %360 = arith.mulf %355, %359 : vector<4x64xf32>
    %361 = vector.extract_strided_slice %360 {offsets = [0, 0], sizes = [2, 32], strides = [1, 1]} : vector<4x64xf32> to vector<2x32xf32>
    %c14_122 = arith.constant 14 : index
    %c0_123 = arith.constant 0 : index
    %362 = vector.load %arg11[%c14_122, %c0_123] : memref<16x64xf32, #tpu.memory_space<vmem>>, vector<2x32xf32>
    tpu.vector_store %arg11[%c14_122, %c0_123], %361 {strides = array<i32>} : memref<16x64xf32, #tpu.memory_space<vmem>>, vector<2x32xf32>,
    %363 = vector.extract_strided_slice %360 {offsets = [2, 32], sizes = [2, 32], strides = [1, 1]} : vector<4x64xf32> to vector<2x32xf32>
    %c0_124 = arith.constant 0 : index
    %c32_125 = arith.constant 32 : index
    %364 = vector.load %arg11[%c0_124, %c32_125] : memref<16x64xf32, #tpu.memory_space<vmem>>, vector<2x32xf32>
    tpu.vector_store %arg11[%c0_124, %c32_125], %363 {strides = array<i32>} : memref<16x64xf32, #tpu.memory_space<vmem>>, vector<2x32xf32>,
    %c0_126 = arith.constant 0 : index
    %c0_127 = arith.constant 0 : index
    %365 = vector.load %arg11[%c0_126, %c0_127] : memref<16x64xf32, #tpu.memory_space<vmem>>, vector<16x64xf32>
    %c0_128 = arith.constant 0 : index
    %c0_129 = arith.constant 0 : index
    %366 = vector.load %arg8[%c0_128, %c0_129] : memref<64x128xf32, #tpu.memory_space<vmem>>, vector<64x128xf32>
    %cst_130 = arith.constant dense<0.000000e+00> : vector<16x128xf32>
    %367 = tpu.matmul %365, %366, %cst_130 {dimension_numbers = #tpu.dot_dimension_numbers<[1], [0], [0], [1], [0, 0, 1, 1], [], []>} : vector<16x64xf32>, vector<64x128xf32>, vector<16x128xf32> -> vector<16x128xf32>
    %c0_131 = arith.constant 0 : index
    %c0_132 = arith.constant 0 : index
    %368 = vector.load %arg9[%c0_131, %c0_132] : memref<1x128xf32, #tpu.memory_space<vmem>>, vector<1x128xf32>
    %369 = vector.broadcast %368 : vector<1x128xf32> to vector<16x128xf32>
    %370 = arith.addf %367, %369 : vector<16x128xf32>
    %c0_133 = arith.constant 0 : index
    %c0_134 = arith.constant 0 : index
    %371 = vector.load %arg10[%c0_133, %c0_134] : memref<16x128xf32, #tpu.memory_space<vmem>>, vector<16x128xf32>
    tpu.vector_store %arg10[%c0_133, %c0_134], %370 {strides = array<i32>} : memref<16x128xf32, #tpu.memory_space<vmem>>, vector<16x128xf32>,
    return
  }
}

</mosaic_0001>

<llo_original>
// kernel: forward.1
$region0: #{forward.1}
  #allocation0 [shape = 'u32[]', space=smem, size = 0x4, offset = 0x4, fixed_abs, tag = 'smem constant byte address 0x4 - core index']
  #allocation1 [shape = 'u32[72,128]{1,0:T(1,128)}', space=vmem, size = 0x9000, scoped, tag = 'internal scratch']
  #allocation2 [shape = 'f32[16,64]{1,0:T(8,128)}', space=vmem, size = 0x2000, scoped, tag = 'scratch operand']
  %s0 = inlined_call_operand.vmem [shape: f32[32,256], index: 0, kind: input, shape index: {}]
  %s1 = inlined_call_operand.vmem [shape: f32[256,256], index: 1, kind: input, shape index: {}]
  %s2 = inlined_call_operand.vmem [shape: f32[1,64], index: 2, kind: input, shape index: {}]
  %s3 = inlined_call_operand.vmem [shape: f32[256,128], index: 3, kind: input, shape index: {}]
  %s4 = inlined_call_operand.vmem [shape: f32[1,32], index: 4, kind: input, shape index: {}]
  %s5 = inlined_call_operand.vmem [shape: f32[32,256], index: 5, kind: input, shape index: {}]
  %s6 = inlined_call_operand.vmem [shape: f32[1,256], index: 6, kind: input, shape index: {}]
  %s7 = inlined_call_operand.vmem [shape: f32[64,256], index: 7, kind: input, shape index: {}]
  %s8 = inlined_call_operand.vmem [shape: f32[64,128], index: 8, kind: input, shape index: {}]
  %s9 = inlined_call_operand.vmem [shape: f32[1,128], index: 9, kind: input, shape index: {}]
  %s10 = inlined_call_operand.vmem [shape: f32[16,128], index: 10, kind: output, shape index: {}]
  %s11 = sld [smem:[#allocation0]]
  $region50: #{forward.1} parent=0
    _
  %s13 = ssub.s32 1, %s11
  %s14 = scalar_select 0, %s13, %s11
  // Predicated region
  $region2: #{forward.1} parent=0 // pred_check
    _
  $region3: #{forward.1} parent=0 // pred_check_branch
    %16 = sbr.rel (0) target = $region5
  $region4: #{forward.1} parent=0 // pred_region
    _
  $region5: #{forward.1} parent=0 // pred_fallthru
    _
  // Predicated region
  $region6: #{forward.1} parent=0 // pred_check
    _
  $region7: #{forward.1} parent=0 // pred_check_branch
    %18 = sbr.rel (0) target = $region9
  $region8: #{forward.1} parent=0 // pred_region
    _
  $region9: #{forward.1} parent=0 // pred_fallthru
    _
  // Predicated region
  $region10: #{forward.1} parent=0 // pred_check
    _
  $region11: #{forward.1} parent=0 // pred_check_branch
    %20 = sbr.rel (0) target = $region13
  $region12: #{forward.1} parent=0 // pred_region
    _
  $region13: #{forward.1} parent=0 // pred_fallthru
    _
  // Predicated region
  $region14: #{forward.1} parent=0 // pred_check
    _
  $region15: #{forward.1} parent=0 // pred_check_branch
    %22 = sbr.rel (0) target = $region17
  $region16: #{forward.1} parent=0 // pred_region
    _
  $region17: #{forward.1} parent=0 // pred_fallthru
    _
  // Predicated region
  $region18: #{forward.1} parent=0 // pred_check
    _
  $region19: #{forward.1} parent=0 // pred_check_branch
    %24 = sbr.rel (0) target = $region21
  $region20: #{forward.1} parent=0 // pred_region
    _
  $region21: #{forward.1} parent=0 // pred_fallthru
    _
  // Predicated region
  $region22: #{forward.1} parent=0 // pred_check
    _
  $region23: #{forward.1} parent=0 // pred_check_branch
    %26 = sbr.rel (0) target = $region25
  $region24: #{forward.1} parent=0 // pred_region
    _
  $region25: #{forward.1} parent=0 // pred_fallthru
    _
  // Predicated region
  $region26: #{forward.1} parent=0 // pred_check
    _
  $region27: #{forward.1} parent=0 // pred_check_branch
    %28 = sbr.rel (0) target = $region29
  $region28: #{forward.1} parent=0 // pred_region
    _
  $region29: #{forward.1} parent=0 // pred_fallthru
    _
  // Predicated region
  $region30: #{forward.1} parent=0 // pred_check
    _
  $region31: #{forward.1} parent=0 // pred_check_branch
    %30 = sbr.rel (0) target = $region33
  $region32: #{forward.1} parent=0 // pred_region
    _
  $region33: #{forward.1} parent=0 // pred_fallthru
    _
  // Predicated region
  $region34: #{forward.1} parent=0 // pred_check
    _
  $region35: #{forward.1} parent=0 // pred_check_branch
    %32 = sbr.rel (0) target = $region37
  $region36: #{forward.1} parent=0 // pred_region
    _
  $region37: #{forward.1} parent=0 // pred_fallthru
    _
  // Predicated region
  $region38: #{forward.1} parent=0 // pred_check
    _
  $region39: #{forward.1} parent=0 // pred_check_branch
    %34 = sbr.rel (0) target = $region41
  $region40: #{forward.1} parent=0 // pred_region
    _
  $region41: #{forward.1} parent=0 // pred_fallthru
    _
  %v35 = vld [vmem:[%s0] sm:$0xff]
  %v36 = vld [vmem:[%s0 + $0x8] sm:$0xff]
  %v37 = vld [vmem:[%s0 + $0x10] sm:$0xff]
  %v38 = vld [vmem:[%s0 + $0x18] sm:$0xff]
  %v39 = vld [vmem:[%s0 + $0x20] sm:$0xff]
  %v40 = vld [vmem:[%s0 + $0x28] sm:$0xff]
  %v41 = vld [vmem:[%s0 + $0x30] sm:$0xff]
  %v42 = vld [vmem:[%s0 + $0x38] sm:$0xff]
  %v43 = vld [vmem:[%s1] sm:$0xff]
  %v44 = vld [vmem:[%s1 + $0x8] sm:$0xff]
  %v45 = vld [vmem:[%s1 + $0x10] sm:$0xff]
  %v46 = vld [vmem:[%s1 + $0x18] sm:$0xff]
  %v47 = vld [vmem:[%s1 + $0x20] sm:$0xff]
  %v48 = vld [vmem:[%s1 + $0x28] sm:$0xff]
  %v49 = vld [vmem:[%s1 + $0x30] sm:$0xff]
  %v50 = vld [vmem:[%s1 + $0x38] sm:$0xff]
  %v51 = vld [vmem:[%s1 + $0x40] sm:$0xff]
  %v52 = vld [vmem:[%s1 + $0x48] sm:$0xff]
  %v53 = vld [vmem:[%s1 + $0x50] sm:$0xff]
  %v54 = vld [vmem:[%s1 + $0x58] sm:$0xff]
  %v55 = vld [vmem:[%s1 + $0x60] sm:$0xff]
  %v56 = vld [vmem:[%s1 + $0x68] sm:$0xff]
  %v57 = vld [vmem:[%s1 + $0x70] sm:$0xff]
  %v58 = vld [vmem:[%s1 + $0x78] sm:$0xff]
  %v59 = vld [vmem:[%s1 + $0x80] sm:$0xff]
  %v60 = vld [vmem:[%s1 + $0x88] sm:$0xff]
  %v61 = vld [vmem:[%s1 + $0x90] sm:$0xff]
  %v62 = vld [vmem:[%s1 + $0x98] sm:$0xff]
  %v63 = vld [vmem:[%s1 + $0xa0] sm:$0xff]
  %v64 = vld [vmem:[%s1 + $0xa8] sm:$0xff]
  %v65 = vld [vmem:[%s1 + $0xb0] sm:$0xff]
  %v66 = vld [vmem:[%s1 + $0xb8] sm:$0xff]
  %v67 = vld [vmem:[%s1 + $0xc0] sm:$0xff]
  %v68 = vld [vmem:[%s1 + $0xc8] sm:$0xff]
  %v69 = vld [vmem:[%s1 + $0xd0] sm:$0xff]
  %v70 = vld [vmem:[%s1 + $0xd8] sm:$0xff]
  %v71 = vld [vmem:[%s1 + $0xe0] sm:$0xff]
  %v72 = vld [vmem:[%s1 + $0xe8] sm:$0xff]
  %v73 = vld [vmem:[%s1 + $0xf0] sm:$0xff]
  %v74 = vld [vmem:[%s1 + $0xf8] sm:$0xff]
  %v75 = vld [vmem:[%s1 + $0x100] sm:$0xff]
  %v76 = vld [vmem:[%s1 + $0x108] sm:$0xff]
  %v77 = vld [vmem:[%s1 + $0x110] sm:$0xff]
  %v78 = vld [vmem:[%s1 + $0x118] sm:$0xff]
  %v79 = vld [vmem:[%s1 + $0x120] sm:$0xff]
  %v80 = vld [vmem:[%s1 + $0x128] sm:$0xff]
  %v81 = vld [vmem:[%s1 + $0x130] sm:$0xff]
  %v82 = vld [vmem:[%s1 + $0x138] sm:$0xff]
  %v83 = vld [vmem:[%s1 + $0x140] sm:$0xff]
  %v84 = vld [vmem:[%s1 + $0x148] sm:$0xff]
  %v85 = vld [vmem:[%s1 + $0x150] sm:$0xff]
  %v86 = vld [vmem:[%s1 + $0x158] sm:$0xff]
  %v87 = vld [vmem:[%s1 + $0x160] sm:$0xff]
  %v88 = vld [vmem:[%s1 + $0x168] sm:$0xff]
  %v89 = vld [vmem:[%s1 + $0x170] sm:$0xff]
  %v90 = vld [vmem:[%s1 + $0x178] sm:$0xff]
  %v91 = vld [vmem:[%s1 + $0x180] sm:$0xff]
  %v92 = vld [vmem:[%s1 + $0x188] sm:$0xff]
  %v93 = vld [vmem:[%s1 + $0x190] sm:$0xff]
  %v94 = vld [vmem:[%s1 + $0x198] sm:$0xff]
  %v95 = vld [vmem:[%s1 + $0x1a0] sm:$0xff]
  %v96 = vld [vmem:[%s1 + $0x1a8] sm:$0xff]
  %v97 = vld [vmem:[%s1 + $0x1b0] sm:$0xff]
  %v98 = vld [vmem:[%s1 + $0x1b8] sm:$0xff]
  %v99 = vld [vmem:[%s1 + $0x1c0] sm:$0xff]
  %v100 = vld [vmem:[%s1 + $0x1c8] sm:$0xff]
  %v101 = vld [vmem:[%s1 + $0x1d0] sm:$0xff]
  %v102 = vld [vmem:[%s1 + $0x1d8] sm:$0xff]
  %v103 = vld [vmem:[%s1 + $0x1e0] sm:$0xff]
  %v104 = vld [vmem:[%s1 + $0x1e8] sm:$0xff]
  %v105 = vld [vmem:[%s1 + $0x1f0] sm:$0xff]
  %v106 = vld [vmem:[%s1 + $0x1f8] sm:$0xff]
  %107 = vmatpush.msra.mxu0 %v73
  %108 = vmatpush.msra.mxu0 %v71
  %109 = vmatpush.msra.mxu0 %v69
  %110 = vmatpush.msra.mxu0 %v67
  %111 = vmatpush.msra.mxu0 %v65
  %112 = vmatpush.msra.mxu0 %v63
  %113 = vmatpush.msra.mxu0 %v61
  %114 = vmatpush.msra.mxu0 %v59
  %115 = vmatpush.msra.mxu0 %v57
  %116 = vmatpush.msra.mxu0 %v55
  %117 = vmatpush.msra.mxu0 %v53
  %118 = vmatpush.msra.mxu0 %v51
  %119 = vmatpush.msra.mxu0 %v49
  %120 = vmatpush.msra.mxu0 %v47
  %121 = vmatpush.msra.mxu0 %v45
  %122 = vmatpush.msra.mxu0 %v43
  %123 = vmatmul.f32.gmra.mxu0 %v35
  %v124 = vpop.f32.mrf.mxu0
  %v125 = vadd.f32 0.0, %v124
  %126 = vmatmul.f32.gmra.mxu0 %v37
  %v127 = vpop.f32.mrf.mxu0
  %v128 = vadd.f32 0.0, %v127
  %129 = vmatmul.f32.gmra.mxu0 %v39
  %v130 = vpop.f32.mrf.mxu0
  %v131 = vadd.f32 0.0, %v130
  %132 = vmatmul.f32.gmra.mxu0 %v41
  %v133 = vpop.f32.mrf.mxu0
  %v134 = vadd.f32 0.0, %v133
  %135 = vdwg.mxu0
  %136 = vmatpush.msra.mxu0 %v105
  %137 = vmatpush.msra.mxu0 %v103
  %138 = vmatpush.msra.mxu0 %v101
  %139 = vmatpush.msra.mxu0 %v99
  %140 = vmatpush.msra.mxu0 %v97
  %141 = vmatpush.msra.mxu0 %v95
  %142 = vmatpush.msra.mxu0 %v93
  %143 = vmatpush.msra.mxu0 %v91
  %144 = vmatpush.msra.mxu0 %v89
  %145 = vmatpush.msra.mxu0 %v87
  %146 = vmatpush.msra.mxu0 %v85
  %147 = vmatpush.msra.mxu0 %v83
  %148 = vmatpush.msra.mxu0 %v81
  %149 = vmatpush.msra.mxu0 %v79
  %150 = vmatpush.msra.mxu0 %v77
  %151 = vmatpush.msra.mxu0 %v75
  %152 = vmatmul.f32.gmra.mxu0 %v36
  %v153 = vpop.f32.mrf.mxu0
  %v154 = vadd.f32 %v125, %v153
  %155 = vmatmul.f32.gmra.mxu0 %v38
  %v156 = vpop.f32.mrf.mxu0
  %v157 = vadd.f32 %v128, %v156
  %158 = vmatmul.f32.gmra.mxu0 %v40
  %v159 = vpop.f32.mrf.mxu0
  %v160 = vadd.f32 %v131, %v159
  %161 = vmatmul.f32.gmra.mxu0 %v42
  %v162 = vpop.f32.mrf.mxu0
  %v163 = vadd.f32 %v134, %v162
  %164 = vdwg.mxu0
  %165 = vmatpush.msra.mxu0 %v74
  %166 = vmatpush.msra.mxu0 %v72
  %167 = vmatpush.msra.mxu0 %v70
  %168 = vmatpush.msra.mxu0 %v68
  %169 = vmatpush.msra.mxu0 %v66
  %170 = vmatpush.msra.mxu0 %v64
  %171 = vmatpush.msra.mxu0 %v62
  %172 = vmatpush.msra.mxu0 %v60
  %173 = vmatpush.msra.mxu0 %v58
  %174 = vmatpush.msra.mxu0 %v56
  %175 = vmatpush.msra.mxu0 %v54
  %176 = vmatpush.msra.mxu0 %v52
  %177 = vmatpush.msra.mxu0 %v50
  %178 = vmatpush.msra.mxu0 %v48
  %179 = vmatpush.msra.mxu0 %v46
  %180 = vmatpush.msra.mxu0 %v44
  %181 = vmatmul.f32.gmra.mxu0 %v35
  %v182 = vpop.f32.mrf.mxu0
  %v183 = vadd.f32 0.0, %v182
  %184 = vmatmul.f32.gmra.mxu0 %v37
  %v185 = vpop.f32.mrf.mxu0
  %v186 = vadd.f32 0.0, %v185
  %187 = vmatmul.f32.gmra.mxu0 %v39
  %v188 = vpop.f32.mrf.mxu0
  %v189 = vadd.f32 0.0, %v188
  %190 = vmatmul.f32.gmra.mxu0 %v41
  %v191 = vpop.f32.mrf.mxu0
  %v192 = vadd.f32 0.0, %v191
  %193 = vdwg.mxu0
  %194 = vmatpush.msra.mxu0 %v106
  %195 = vmatpush.msra.mxu0 %v104
  %196 = vmatpush.msra.mxu0 %v102
  %197 = vmatpush.msra.mxu0 %v100
  %198 = vmatpush.msra.mxu0 %v98
  %199 = vmatpush.msra.mxu0 %v96
  %200 = vmatpush.msra.mxu0 %v94
  %201 = vmatpush.msra.mxu0 %v92
  %202 = vmatpush.msra.mxu0 %v90
  %203 = vmatpush.msra.mxu0 %v88
  %204 = vmatpush.msra.mxu0 %v86
  %205 = vmatpush.msra.mxu0 %v84
  %206 = vmatpush.msra.mxu0 %v82
  %207 = vmatpush.msra.mxu0 %v80
  %208 = vmatpush.msra.mxu0 %v78
  %209 = vmatpush.msra.mxu0 %v76
  %210 = vmatmul.f32.gmra.mxu0 %v36
  %v211 = vpop.f32.mrf.mxu0
  %v212 = vadd.f32 %v183, %v211
  %213 = vmatmul.f32.gmra.mxu0 %v38
  %v214 = vpop.f32.mrf.mxu0
  %v215 = vadd.f32 %v186, %v214
  %216 = vmatmul.f32.gmra.mxu0 %v40
  %v217 = vpop.f32.mrf.mxu0
  %v218 = vadd.f32 %v189, %v217
  %219 = vmatmul.f32.gmra.mxu0 %v42
  %v220 = vpop.f32.mrf.mxu0
  %v221 = vadd.f32 %v192, %v220
  %222 = vdwg.mxu0
  %227 = vrot.lane.b32.xlu0 %v154, 64
  %v228 = vpop.permute.xlu0 %227
  %229 = vrot.lane.b32.xlu0 %v157, 64
  %v230 = vpop.permute.xlu0 %229
  %231 = vrot.lane.b32.xlu0 %v160, 64
  %v232 = vpop.permute.xlu0 %231
  %233 = vrot.lane.b32.xlu0 %v163, 64
  %v234 = vpop.permute.xlu0 %233
  %v239 = vmax.f32 %v154, %v228
  %v240 = vmax.f32 %v157, %v230
  %v241 = vmax.f32 %v160, %v232
  %v242 = vmax.f32 %v163, %v234
  %247 = vrot.lane.b32.xlu0 %v212, 64
  %v248 = vpop.permute.xlu0 %247
  %249 = vrot.lane.b32.xlu0 %v215, 64
  %v250 = vpop.permute.xlu0 %249
  %251 = vrot.lane.b32.xlu0 %v218, 64
  %v252 = vpop.permute.xlu0 %251
  %253 = vrot.lane.b32.xlu0 %v221, 64
  %v254 = vpop.permute.xlu0 %253
  %v259 = vmax.f32 %v212, %v248
  %v260 = vmax.f32 %v215, %v250
  %v261 = vmax.f32 %v218, %v252
  %v262 = vmax.f32 %v221, %v254
  %v263 = vmax.f32 %v239, %v259
  %v264 = vmax.f32 %v240, %v260
  %v265 = vmax.f32 %v241, %v261
  %v266 = vmax.f32 %v242, %v262
  %v267 = vld [vmem:[%s2] sm:$0x1]
  %v269 = vperm.slane %v267, 0
  %v271 = vadd.f32 %v263, %v269
  %v272 = vadd.f32 %v264, %v269
  %v273 = vadd.f32 %v265, %v269
  %v274 = vadd.f32 %v266, %v269
  %v275 = vmax.f32 %v271, 0.0
  %v276 = vmax.f32 %v272, 0.0
  %v277 = vmax.f32 %v273, 0.0
  %v278 = vmax.f32 %v274, 0.0
  %vm281 = vcmask 1041408
  %v282 = vrot.slane %v277, 6
  %v283 = vrot.slane %v278, 6
  %v284 = vsel %vm281, %v282, %v283
  %v287 = vsel %vm281, 0.0, %v282
  %vm290 = vcmask 1045504
  %v291 = vrot.slane %v275, 2
  %v292 = vrot.slane %v276, 2
  %v293 = vsel %vm290, %v291, %v292
  %v295 = vsel %vm290, %v292, 0.0
  %296 = vrot.lane.b32.xlu0 %v275, 64
  %v297 = vpop.permute.xlu0 %296
  %298 = vrot.lane.b32.xlu0 %v276, 64
  %v299 = vpop.permute.xlu0 %298
  %303 = vrot.lane.b32.xlu0 %v293, 64
  %v304 = vpop.permute.xlu0 %303
  %305 = vrot.lane.b32.xlu0 %v295, 64
  %v306 = vpop.permute.xlu0 %305
  %vm309 = vcmask 523264
  %v310 = vsel %vm309, %v287, %v297
  %v311 = vsel %vm309, %v284, %v299
  %v312 = vsel %vm309, %v277, %v304
  %v313 = vsel %vm309, %v278, %v306
  %v314 = vld [vmem:[%s3] sm:$0xff]
  %v315 = vld [vmem:[%s3 + $0x8] sm:$0xff]
  %v316 = vld [vmem:[%s3 + $0x10] sm:$0xff]
  %v317 = vld [vmem:[%s3 + $0x18] sm:$0xff]
  %v318 = vld [vmem:[%s3 + $0x20] sm:$0xff]
  %v319 = vld [vmem:[%s3 + $0x28] sm:$0xff]
  %v320 = vld [vmem:[%s3 + $0x30] sm:$0xff]
  %v321 = vld [vmem:[%s3 + $0x38] sm:$0xff]
  %v322 = vld [vmem:[%s3 + $0x40] sm:$0xff]
  %v323 = vld [vmem:[%s3 + $0x48] sm:$0xff]
  %v324 = vld [vmem:[%s3 + $0x50] sm:$0xff]
  %v325 = vld [vmem:[%s3 + $0x58] sm:$0xff]
  %v326 = vld [vmem:[%s3 + $0x60] sm:$0xff]
  %v327 = vld [vmem:[%s3 + $0x68] sm:$0xff]
  %v328 = vld [vmem:[%s3 + $0x70] sm:$0xff]
  %v329 = vld [vmem:[%s3 + $0x78] sm:$0xff]
  %v330 = vld [vmem:[%s3 + $0x80] sm:$0xff]
  %v331 = vld [vmem:[%s3 + $0x88] sm:$0xff]
  %v332 = vld [vmem:[%s3 + $0x90] sm:$0xff]
  %v333 = vld [vmem:[%s3 + $0x98] sm:$0xff]
  %v334 = vld [vmem:[%s3 + $0xa0] sm:$0xff]
  %v335 = vld [vmem:[%s3 + $0xa8] sm:$0xff]
  %v336 = vld [vmem:[%s3 + $0xb0] sm:$0xff]
  %v337 = vld [vmem:[%s3 + $0xb8] sm:$0xff]
  %v338 = vld [vmem:[%s3 + $0xc0] sm:$0xff]
  %v339 = vld [vmem:[%s3 + $0xc8] sm:$0xff]
  %v340 = vld [vmem:[%s3 + $0xd0] sm:$0xff]
  %v341 = vld [vmem:[%s3 + $0xd8] sm:$0xff]
  %v342 = vld [vmem:[%s3 + $0xe0] sm:$0xff]
  %v343 = vld [vmem:[%s3 + $0xe8] sm:$0xff]
  %v344 = vld [vmem:[%s3 + $0xf0] sm:$0xff]
  %v345 = vld [vmem:[%s3 + $0xf8] sm:$0xff]
  %346 = vmatpush.msra.mxu0 %v329
  %347 = vmatpush.msra.mxu0 %v328
  %348 = vmatpush.msra.mxu0 %v327
  %349 = vmatpush.msra.mxu0 %v326
  %350 = vmatpush.msra.mxu0 %v325
  %351 = vmatpush.msra.mxu0 %v324
  %352 = vmatpush.msra.mxu0 %v323
  %353 = vmatpush.msra.mxu0 %v322
  %354 = vmatpush.msra.mxu0 %v321
  %355 = vmatpush.msra.mxu0 %v320
  %356 = vmatpush.msra.mxu0 %v319
  %357 = vmatpush.msra.mxu0 %v318
  %358 = vmatpush.msra.mxu0 %v317
  %359 = vmatpush.msra.mxu0 %v316
  %360 = vmatpush.msra.mxu0 %v315
  %361 = vmatpush.msra.mxu0 %v314
  %362 = vmatmul.f32.gmra.mxu0 %v310
  %v363 = vpop.f32.mrf.mxu0
  %v364 = vadd.f32 0.0, %v363
  %365 = vmatmul.f32.gmra.mxu0 %v311
  %v366 = vpop.f32.mrf.mxu0
  %v367 = vadd.f32 0.0, %v366
  %368 = vdwg.mxu0
  %369 = vmatpush.msra.mxu0 %v345
  %370 = vmatpush.msra.mxu0 %v344
  %371 = vmatpush.msra.mxu0 %v343
  %372 = vmatpush.msra.mxu0 %v342
  %373 = vmatpush.msra.mxu0 %v341
  %374 = vmatpush.msra.mxu0 %v340
  %375 = vmatpush.msra.mxu0 %v339
  %376 = vmatpush.msra.mxu0 %v338
  %377 = vmatpush.msra.mxu0 %v337
  %378 = vmatpush.msra.mxu0 %v336
  %379 = vmatpush.msra.mxu0 %v335
  %380 = vmatpush.msra.mxu0 %v334
  %381 = vmatpush.msra.mxu0 %v333
  %382 = vmatpush.msra.mxu0 %v332
  %383 = vmatpush.msra.mxu0 %v331
  %384 = vmatpush.msra.mxu0 %v330
  %385 = vmatmul.f32.gmra.mxu0 %v312
  %v386 = vpop.f32.mrf.mxu0
  %v387 = vadd.f32 %v364, %v386
  %388 = vmatmul.f32.gmra.mxu0 %v313
  %v389 = vpop.f32.mrf.mxu0
  %v390 = vadd.f32 %v367, %v389
  %391 = vdwg.mxu0
  %394 = vrot.lane.b32.xlu0 %v387, 96
  %v395 = vpop.permute.xlu0 %394
  %396 = vrot.lane.b32.xlu0 %v390, 96
  %v397 = vpop.permute.xlu0 %396
  %v400 = vmax.f32 %v387, %v395
  %v401 = vmax.f32 %v390, %v397
  %404 = vrot.lane.b32.xlu0 %v400, 64
  %v405 = vpop.permute.xlu0 %404
  %406 = vrot.lane.b32.xlu0 %v401, 64
  %v407 = vpop.permute.xlu0 %406
  %v410 = vmax.f32 %v400, %v405
  %v411 = vmax.f32 %v401, %v407
  %v412 = vld [vmem:[%s4] sm:$0x1]
  %v414 = vperm.slane %v412, 0
  %v416 = vadd.f32 %v410, %v414
  %v417 = vadd.f32 %v411, %v414
  %v418 = vmax.f32 %v416, 0.0
  %v419 = vmax.f32 %v417, 0.0
  %v420 = vld [vmem:[%s5] sm:$0xff]
  %v421 = vld [vmem:[%s5 + $0x8] sm:$0xff]
  %v422 = vld [vmem:[%s5 + $0x10] sm:$0xff]
  %v423 = vld [vmem:[%s5 + $0x18] sm:$0xff]
  %v424 = vld [vmem:[%s5 + $0x20] sm:$0xff]
  %v425 = vld [vmem:[%s5 + $0x28] sm:$0xff]
  %v426 = vld [vmem:[%s5 + $0x30] sm:$0xff]
  %v427 = vld [vmem:[%s5 + $0x38] sm:$0xff]
  %v428 = vld [vmem:[%s6] sm:$0x3]
  %v430 = vperm.slane %v428, 0
  %v431 = vperm.slane %v428, 1
  %vm434 = vcmask 261120
  %v436 = vsel %vm434, %v418, 0
  %v439 = vsel %vm434, %v419, 0
  %441 = vmatpush.msra.mxu0 0.0
  %442 = vmatpush.msra.mxu0 0.0
  %443 = vmatpush.msra.mxu0 0.0
  %444 = vmatpush.msra.mxu0 0.0
  %445 = vmatpush.msra.mxu0 0.0
  %446 = vmatpush.msra.mxu0 0.0
  %447 = vmatpush.msra.mxu0 0.0
  %448 = vmatpush.msra.mxu0 0.0
  %449 = vmatpush.msra.mxu0 0.0
  %450 = vmatpush.msra.mxu0 0.0
  %451 = vmatpush.msra.mxu0 0.0
  %452 = vmatpush.msra.mxu0 0.0
  %453 = vmatpush.msra.mxu0 %v426
  %454 = vmatpush.msra.mxu0 %v424
  %455 = vmatpush.msra.mxu0 %v422
  %456 = vmatpush.msra.mxu0 %v420
  %457 = vmatmul.f32.gmra.mxu0 %v436
  %v458 = vpop.f32.mrf.mxu0
  %v459 = vadd.f32 %v430, %v458
  %460 = vmatmul.f32.gmra.mxu0 %v439
  %v461 = vpop.f32.mrf.mxu0
  %v462 = vadd.f32 %v430, %v461
  %463 = vdwg.mxu0
  %464 = vmatpush.msra.mxu0 0.0
  %465 = vmatpush.msra.mxu0 0.0
  %466 = vmatpush.msra.mxu0 0.0
  %467 = vmatpush.msra.mxu0 0.0
  %468 = vmatpush.msra.mxu0 0.0
  %469 = vmatpush.msra.mxu0 0.0
  %470 = vmatpush.msra.mxu0 0.0
  %471 = vmatpush.msra.mxu0 0.0
  %472 = vmatpush.msra.mxu0 0.0
  %473 = vmatpush.msra.mxu0 0.0
  %474 = vmatpush.msra.mxu0 0.0
  %475 = vmatpush.msra.mxu0 0.0
  %476 = vmatpush.msra.mxu0 %v427
  %477 = vmatpush.msra.mxu0 %v425
  %478 = vmatpush.msra.mxu0 %v423
  %479 = vmatpush.msra.mxu0 %v421
  %480 = vmatmul.f32.gmra.mxu0 %v436
  %v481 = vpop.f32.mrf.mxu0
  %v482 = vadd.f32 %v431, %v481
  %483 = vmatmul.f32.gmra.mxu0 %v439
  %v484 = vpop.f32.mrf.mxu0
  %v485 = vadd.f32 %v431, %v484
  %486 = vdwg.mxu0
  %v487 = vld [vmem:[%s7] sm:$0xff]
  %v488 = vld [vmem:[%s7 + $0x8] sm:$0xff]
  %v489 = vld [vmem:[%s7 + $0x10] sm:$0xff]
  %v490 = vld [vmem:[%s7 + $0x18] sm:$0xff]
  %v491 = vld [vmem:[%s7 + $0x20] sm:$0xff]
  %v492 = vld [vmem:[%s7 + $0x28] sm:$0xff]
  %v493 = vld [vmem:[%s7 + $0x30] sm:$0xff]
  %v494 = vld [vmem:[%s7 + $0x38] sm:$0xff]
  %v495 = vld [vmem:[%s7 + $0x40] sm:$0xff]
  %v496 = vld [vmem:[%s7 + $0x48] sm:$0xff]
  %v497 = vld [vmem:[%s7 + $0x50] sm:$0xff]
  %v498 = vld [vmem:[%s7 + $0x58] sm:$0xff]
  %v499 = vld [vmem:[%s7 + $0x60] sm:$0xff]
  %v500 = vld [vmem:[%s7 + $0x68] sm:$0xff]
  %v501 = vld [vmem:[%s7 + $0x70] sm:$0xff]
  %v502 = vld [vmem:[%s7 + $0x78] sm:$0xff]
  %v505 = vrot.slane %v462, 4
  %v506 = vrot.slane %v485, 4
  %v509 = vsel %vm281, %v459, %v505
  %v510 = vsel %vm281, %v482, %v506
  %v512 = vsel %vm309, 0.0, 0
  %514 = vmatpush.msra.mxu0 0.0
  %515 = vmatpush.msra.mxu0 0.0
  %516 = vmatpush.msra.mxu0 0.0
  %517 = vmatpush.msra.mxu0 0.0
  %518 = vmatpush.msra.mxu0 0.0
  %519 = vmatpush.msra.mxu0 0.0
  %520 = vmatpush.msra.mxu0 0.0
  %521 = vmatpush.msra.mxu0 0.0
  %522 = vmatpush.msra.mxu0 %v501
  %523 = vmatpush.msra.mxu0 %v499
  %524 = vmatpush.msra.mxu0 %v497
  %525 = vmatpush.msra.mxu0 %v495
  %526 = vmatpush.msra.mxu0 %v493
  %527 = vmatpush.msra.mxu0 %v491
  %528 = vmatpush.msra.mxu0 %v489
  %529 = vmatpush.msra.mxu0 %v487
  %530 = vmatmul.f32.gmra.mxu0 %v512
  %v531 = vpop.f32.mrf.mxu0
  %v532 = vadd.f32 0.0, %v531
  %533 = vdwg.mxu0
  %534 = vmatpush.msra.mxu0 0.0
  %535 = vmatpush.msra.mxu0 0.0
  %536 = vmatpush.msra.mxu0 0.0
  %537 = vmatpush.msra.mxu0 0.0
  %538 = vmatpush.msra.mxu0 0.0
  %539 = vmatpush.msra.mxu0 0.0
  %540 = vmatpush.msra.mxu0 0.0
  %541 = vmatpush.msra.mxu0 0.0
  %542 = vmatpush.msra.mxu0 %v502
  %543 = vmatpush.msra.mxu0 %v500
  %544 = vmatpush.msra.mxu0 %v498
  %545 = vmatpush.msra.mxu0 %v496
  %546 = vmatpush.msra.mxu0 %v494
  %547 = vmatpush.msra.mxu0 %v492
  %548 = vmatpush.msra.mxu0 %v490
  %549 = vmatpush.msra.mxu0 %v488
  %550 = vmatmul.f32.gmra.mxu0 %v512
  %v551 = vpop.f32.mrf.mxu0
  %v552 = vadd.f32 0.0, %v551
  %553 = vdwg.mxu0
  %v554 = vadd.f32 %v509, %v532
  %v555 = vadd.f32 %v510, %v552
  %v556 = vmul.f32 %v554, 0.5
  %v557 = vtanh.pop %v556
  %v558 = vmul.f32 %v557, 0.5
  %v559 = vadd.f32 %v558, 0.5
  %v560 = vtanh.pop %v555
  %v561 = vmul.f32 %v555, 0.5
  %v562 = vtanh.pop %v561
  %v563 = vmul.f32 %v562, 0.5
  %v564 = vadd.f32 %v563, 0.5
  %v565 = vmul.f32 %v559, 0.0
  %v566 = vmul.f32 %v559, %v560
  %568 = vrot.lane.b32.xlu0 %v566, 64
  %v569 = vpop.permute.xlu0 %568
  %v571 = vadd.f32 %v565, %v569
  %v572 = vtanh.pop %v571
  %v573 = vmul.f32 %v564, %v572
  %575 = vrot.lane.b32.xlu0 %v573, 64
  %v576 = vpop.permute.xlu0 %575
  %vm578 = vcmask 254976
  %579 = vst.msk [vmem:[#allocation2] sm:$0x3] %vm578, %v576
  %vm580 = vcmask 519426
  %581 = vst.msk [vmem:[#allocation2 + $0xc] sm:$0xc] %vm580, %v576
  %v584 = vrot.slane %v459, 2
  %v585 = vrot.slane %v482, 2
  %v588 = vrot.slane %v462, 2
  %v589 = vrot.slane %v485, 2
  %v592 = vsel %vm281, %v584, %v588
  %v593 = vsel %vm281, %v585, %v589
  %v594 = vsel %vm309, %v576, 0
  %596 = vmatpush.msra.mxu0 0.0
  %597 = vmatpush.msra.mxu0 0.0
  %598 = vmatpush.msra.mxu0 0.0
  %599 = vmatpush.msra.mxu0 0.0
  %600 = vmatpush.msra.mxu0 0.0
  %601 = vmatpush.msra.mxu0 0.0
  %602 = vmatpush.msra.mxu0 0.0
  %603 = vmatpush.msra.mxu0 0.0
  %604 = vmatpush.msra.mxu0 %v501
  %605 = vmatpush.msra.mxu0 %v499
  %606 = vmatpush.msra.mxu0 %v497
  %607 = vmatpush.msra.mxu0 %v495
  %608 = vmatpush.msra.mxu0 %v493
  %609 = vmatpush.msra.mxu0 %v491
  %610 = vmatpush.msra.mxu0 %v489
  %611 = vmatpush.msra.mxu0 %v487
  %612 = vmatmul.f32.gmra.mxu0 %v594
  %v613 = vpop.f32.mrf.mxu0
  %v614 = vadd.f32 0.0, %v613
  %615 = vdwg.mxu0
  %616 = vmatpush.msra.mxu0 0.0
  %617 = vmatpush.msra.mxu0 0.0
  %618 = vmatpush.msra.mxu0 0.0
  %619 = vmatpush.msra.mxu0 0.0
  %620 = vmatpush.msra.mxu0 0.0
  %621 = vmatpush.msra.mxu0 0.0
  %622 = vmatpush.msra.mxu0 0.0
  %623 = vmatpush.msra.mxu0 0.0
  %624 = vmatpush.msra.mxu0 %v502
  %625 = vmatpush.msra.mxu0 %v500
  %626 = vmatpush.msra.mxu0 %v498
  %627 = vmatpush.msra.mxu0 %v496
  %628 = vmatpush.msra.mxu0 %v494
  %629 = vmatpush.msra.mxu0 %v492
  %630 = vmatpush.msra.mxu0 %v490
  %631 = vmatpush.msra.mxu0 %v488
  %632 = vmatmul.f32.gmra.mxu0 %v594
  %v633 = vpop.f32.mrf.mxu0
  %v634 = vadd.f32 0.0, %v633
  %635 = vdwg.mxu0
  %v636 = vadd.f32 %v592, %v614
  %v637 = vadd.f32 %v593, %v634
  %v638 = vmul.f32 %v636, 0.5
  %v639 = vtanh.pop %v638
  %v640 = vmul.f32 %v639, 0.5
  %v641 = vadd.f32 %v640, 0.5
  %v642 = vtanh.pop %v637
  %v643 = vmul.f32 %v637, 0.5
  %v644 = vtanh.pop %v643
  %v645 = vmul.f32 %v644, 0.5
  %v646 = vadd.f32 %v645, 0.5
  %v647 = vmul.f32 %v641, %v571
  %v648 = vmul.f32 %v641, %v642
  %650 = vrot.lane.b32.xlu0 %v648, 64
  %v651 = vpop.permute.xlu0 %650
  %v653 = vadd.f32 %v647, %v651
  %v654 = vtanh.pop %v653
  %v655 = vmul.f32 %v646, %v654
  %657 = vrot.lane.b32.xlu0 %v655, 64
  %v658 = vpop.permute.xlu0 %657
  %660 = vst.msk [vmem:[#allocation2 + $0x2] sm:$0x3] %vm578, %v658
  %661 = vst.msk [vmem:[#allocation2 + $0xa] sm:$0xc] %vm580, %v658
  %v662 = vrot.slane %v459, 4
  %v663 = vrot.slane %v482, 4
  %v666 = vsel %vm281, %v662, %v462
  %v667 = vsel %vm281, %v663, %v485
  %v668 = vsel %vm309, %v658, 0
  %670 = vmatpush.msra.mxu0 0.0
  %671 = vmatpush.msra.mxu0 0.0
  %672 = vmatpush.msra.mxu0 0.0
  %673 = vmatpush.msra.mxu0 0.0
  %674 = vmatpush.msra.mxu0 0.0
  %675 = vmatpush.msra.mxu0 0.0
  %676 = vmatpush.msra.mxu0 0.0
  %677 = vmatpush.msra.mxu0 0.0
  %678 = vmatpush.msra.mxu0 %v501
  %679 = vmatpush.msra.mxu0 %v499
  %680 = vmatpush.msra.mxu0 %v497
  %681 = vmatpush.msra.mxu0 %v495
  %682 = vmatpush.msra.mxu0 %v493
  %683 = vmatpush.msra.mxu0 %v491
  %684 = vmatpush.msra.mxu0 %v489
  %685 = vmatpush.msra.mxu0 %v487
  %686 = vmatmul.f32.gmra.mxu0 %v668
  %v687 = vpop.f32.mrf.mxu0
  %v688 = vadd.f32 0.0, %v687
  %689 = vdwg.mxu0
  %690 = vmatpush.msra.mxu0 0.0
  %691 = vmatpush.msra.mxu0 0.0
  %692 = vmatpush.msra.mxu0 0.0
  %693 = vmatpush.msra.mxu0 0.0
  %694 = vmatpush.msra.mxu0 0.0
  %695 = vmatpush.msra.mxu0 0.0
  %696 = vmatpush.msra.mxu0 0.0
  %697 = vmatpush.msra.mxu0 0.0
  %698 = vmatpush.msra.mxu0 %v502
  %699 = vmatpush.msra.mxu0 %v500
  %700 = vmatpush.msra.mxu0 %v498
  %701 = vmatpush.msra.mxu0 %v496
  %702 = vmatpush.msra.mxu0 %v494
  %703 = vmatpush.msra.mxu0 %v492
  %704 = vmatpush.msra.mxu0 %v490
  %705 = vmatpush.msra.mxu0 %v488
  %706 = vmatmul.f32.gmra.mxu0 %v668
  %v707 = vpop.f32.mrf.mxu0
  %v708 = vadd.f32 0.0, %v707
  %709 = vdwg.mxu0
  %v710 = vadd.f32 %v666, %v688
  %v711 = vadd.f32 %v667, %v708
  %v712 = vmul.f32 %v710, 0.5
  %v713 = vtanh.pop %v712
  %v714 = vmul.f32 %v713, 0.5
  %v715 = vadd.f32 %v714, 0.5
  %v716 = vtanh.pop %v711
  %v717 = vmul.f32 %v711, 0.5
  %v718 = vtanh.pop %v717
  %v719 = vmul.f32 %v718, 0.5
  %v720 = vadd.f32 %v719, 0.5
  %v721 = vmul.f32 %v715, %v653
  %v722 = vmul.f32 %v715, %v716
  %724 = vrot.lane.b32.xlu0 %v722, 64
  %v725 = vpop.permute.xlu0 %724
  %v727 = vadd.f32 %v721, %v725
  %v728 = vtanh.pop %v727
  %v729 = vmul.f32 %v720, %v728
  %731 = vrot.lane.b32.xlu0 %v729, 64
  %v732 = vpop.permute.xlu0 %731
  %734 = vst.msk [vmem:[#allocation2 + $0x4] sm:$0x3] %vm578, %v732
  %735 = vst.msk [vmem:[#allocation2 + $0x8] sm:$0xc] %vm580, %v732
  %v736 = vrot.slane %v459, 6
  %v737 = vrot.slane %v482, 6
  %v740 = vrot.slane %v462, 6
  %v741 = vrot.slane %v485, 6
  %v744 = vsel %vm281, %v736, %v740
  %v745 = vsel %vm281, %v737, %v741
  %v746 = vsel %vm309, %v732, 0
  %748 = vmatpush.msra.mxu0 0.0
  %749 = vmatpush.msra.mxu0 0.0
  %750 = vmatpush.msra.mxu0 0.0
  %751 = vmatpush.msra.mxu0 0.0
  %752 = vmatpush.msra.mxu0 0.0
  %753 = vmatpush.msra.mxu0 0.0
  %754 = vmatpush.msra.mxu0 0.0
  %755 = vmatpush.msra.mxu0 0.0
  %756 = vmatpush.msra.mxu0 %v501
  %757 = vmatpush.msra.mxu0 %v499
  %758 = vmatpush.msra.mxu0 %v497
  %759 = vmatpush.msra.mxu0 %v495
  %760 = vmatpush.msra.mxu0 %v493
  %761 = vmatpush.msra.mxu0 %v491
  %762 = vmatpush.msra.mxu0 %v489
  %763 = vmatpush.msra.mxu0 %v487
  %764 = vmatmul.f32.gmra.mxu0 %v746
  %v765 = vpop.f32.mrf.mxu0
  %v766 = vadd.f32 0.0, %v765
  %767 = vdwg.mxu0
  %768 = vmatpush.msra.mxu0 0.0
  %769 = vmatpush.msra.mxu0 0.0
  %770 = vmatpush.msra.mxu0 0.0
  %771 = vmatpush.msra.mxu0 0.0
  %772 = vmatpush.msra.mxu0 0.0
  %773 = vmatpush.msra.mxu0 0.0
  %774 = vmatpush.msra.mxu0 0.0
  %775 = vmatpush.msra.mxu0 0.0
  %776 = vmatpush.msra.mxu0 %v502
  %777 = vmatpush.msra.mxu0 %v500
  %778 = vmatpush.msra.mxu0 %v498
  %779 = vmatpush.msra.mxu0 %v496
  %780 = vmatpush.msra.mxu0 %v494
  %781 = vmatpush.msra.mxu0 %v492
  %782 = vmatpush.msra.mxu0 %v490
  %783 = vmatpush.msra.mxu0 %v488
  %784 = vmatmul.f32.gmra.mxu0 %v746
  %v785 = vpop.f32.mrf.mxu0
  %v786 = vadd.f32 0.0, %v785
  %787 = vdwg.mxu0
  %v788 = vadd.f32 %v744, %v766
  %v789 = vadd.f32 %v745, %v786
  %v790 = vmul.f32 %v788, 0.5
  %v791 = vtanh.pop %v790
  %v792 = vmul.f32 %v791, 0.5
  %v793 = vadd.f32 %v792, 0.5
  %v794 = vtanh.pop %v789
  %v795 = vmul.f32 %v789, 0.5
  %v796 = vtanh.pop %v795
  %v797 = vmul.f32 %v796, 0.5
  %v798 = vadd.f32 %v797, 0.5
  %v799 = vmul.f32 %v793, %v727
  %v800 = vmul.f32 %v793, %v794
  %802 = vrot.lane.b32.xlu0 %v800, 64
  %v803 = vpop.permute.xlu0 %802
  %v805 = vadd.f32 %v799, %v803
  %v806 = vtanh.pop %v805
  %v807 = vmul.f32 %v798, %v806
  %809 = vrot.lane.b32.xlu0 %v807, 64
  %v810 = vpop.permute.xlu0 %809
  %812 = vst.msk [vmem:[#allocation2 + $0x6] sm:$0x3] %vm578, %v810
  %813 = vst.msk [vmem:[#allocation2 + $0x6] sm:$0xc] %vm580, %v810
  %v814 = vsel %vm281, %v462, %v662
  %v815 = vsel %vm281, %v485, %v663
  %v816 = vsel %vm309, %v810, 0
  %818 = vmatpush.msra.mxu0 0.0
  %819 = vmatpush.msra.mxu0 0.0
  %820 = vmatpush.msra.mxu0 0.0
  %821 = vmatpush.msra.mxu0 0.0
  %822 = vmatpush.msra.mxu0 0.0
  %823 = vmatpush.msra.mxu0 0.0
  %824 = vmatpush.msra.mxu0 0.0
  %825 = vmatpush.msra.mxu0 0.0
  %826 = vmatpush.msra.mxu0 %v501
  %827 = vmatpush.msra.mxu0 %v499
  %828 = vmatpush.msra.mxu0 %v497
  %829 = vmatpush.msra.mxu0 %v495
  %830 = vmatpush.msra.mxu0 %v493
  %831 = vmatpush.msra.mxu0 %v491
  %832 = vmatpush.msra.mxu0 %v489
  %833 = vmatpush.msra.mxu0 %v487
  %834 = vmatmul.f32.gmra.mxu0 %v816
  %v835 = vpop.f32.mrf.mxu0
  %v836 = vadd.f32 0.0, %v835
  %837 = vdwg.mxu0
  %838 = vmatpush.msra.mxu0 0.0
  %839 = vmatpush.msra.mxu0 0.0
  %840 = vmatpush.msra.mxu0 0.0
  %841 = vmatpush.msra.mxu0 0.0
  %842 = vmatpush.msra.mxu0 0.0
  %843 = vmatpush.msra.mxu0 0.0
  %844 = vmatpush.msra.mxu0 0.0
  %845 = vmatpush.msra.mxu0 0.0
  %846 = vmatpush.msra.mxu0 %v502
  %847 = vmatpush.msra.mxu0 %v500
  %848 = vmatpush.msra.mxu0 %v498
  %849 = vmatpush.msra.mxu0 %v496
  %850 = vmatpush.msra.mxu0 %v494
  %851 = vmatpush.msra.mxu0 %v492
  %852 = vmatpush.msra.mxu0 %v490
  %853 = vmatpush.msra.mxu0 %v488
  %854 = vmatmul.f32.gmra.mxu0 %v816
  %v855 = vpop.f32.mrf.mxu0
  %v856 = vadd.f32 0.0, %v855
  %857 = vdwg.mxu0
  %v858 = vadd.f32 %v814, %v836
  %v859 = vadd.f32 %v815, %v856
  %v860 = vmul.f32 %v858, 0.5
  %v861 = vtanh.pop %v860
  %v862 = vmul.f32 %v861, 0.5
  %v863 = vadd.f32 %v862, 0.5
  %v864 = vtanh.pop %v859
  %v865 = vmul.f32 %v859, 0.5
  %v866 = vtanh.pop %v865
  %v867 = vmul.f32 %v866, 0.5
  %v868 = vadd.f32 %v867, 0.5
  %v869 = vmul.f32 %v863, %v805
  %v870 = vmul.f32 %v863, %v864
  %872 = vrot.lane.b32.xlu0 %v870, 64
  %v873 = vpop.permute.xlu0 %872
  %v875 = vadd.f32 %v869, %v873
  %v876 = vtanh.pop %v875
  %v877 = vmul.f32 %v868, %v876
  %879 = vrot.lane.b32.xlu0 %v877, 64
  %v880 = vpop.permute.xlu0 %879
  %882 = vst.msk [vmem:[#allocation2 + $0x8] sm:$0x3] %vm578, %v880
  %883 = vst.msk [vmem:[#allocation2 + $0x4] sm:$0xc] %vm580, %v880
  %v884 = vsel %vm281, %v588, %v584
  %v885 = vsel %vm281, %v589, %v585
  %v886 = vsel %vm309, %v880, 0
  %888 = vmatpush.msra.mxu0 0.0
  %889 = vmatpush.msra.mxu0 0.0
  %890 = vmatpush.msra.mxu0 0.0
  %891 = vmatpush.msra.mxu0 0.0
  %892 = vmatpush.msra.mxu0 0.0
  %893 = vmatpush.msra.mxu0 0.0
  %894 = vmatpush.msra.mxu0 0.0
  %895 = vmatpush.msra.mxu0 0.0
  %896 = vmatpush.msra.mxu0 %v501
  %897 = vmatpush.msra.mxu0 %v499
  %898 = vmatpush.msra.mxu0 %v497
  %899 = vmatpush.msra.mxu0 %v495
  %900 = vmatpush.msra.mxu0 %v493
  %901 = vmatpush.msra.mxu0 %v491
  %902 = vmatpush.msra.mxu0 %v489
  %903 = vmatpush.msra.mxu0 %v487
  %904 = vmatmul.f32.gmra.mxu0 %v886
  %v905 = vpop.f32.mrf.mxu0
  %v906 = vadd.f32 0.0, %v905
  %907 = vdwg.mxu0
  %908 = vmatpush.msra.mxu0 0.0
  %909 = vmatpush.msra.mxu0 0.0
  %910 = vmatpush.msra.mxu0 0.0
  %911 = vmatpush.msra.mxu0 0.0
  %912 = vmatpush.msra.mxu0 0.0
  %913 = vmatpush.msra.mxu0 0.0
  %914 = vmatpush.msra.mxu0 0.0
  %915 = vmatpush.msra.mxu0 0.0
  %916 = vmatpush.msra.mxu0 %v502
  %917 = vmatpush.msra.mxu0 %v500
  %918 = vmatpush.msra.mxu0 %v498
  %919 = vmatpush.msra.mxu0 %v496
  %920 = vmatpush.msra.mxu0 %v494
  %921 = vmatpush.msra.mxu0 %v492
  %922 = vmatpush.msra.mxu0 %v490
  %923 = vmatpush.msra.mxu0 %v488
  %924 = vmatmul.f32.gmra.mxu0 %v886
  %v925 = vpop.f32.mrf.mxu0
  %v926 = vadd.f32 0.0, %v925
  %927 = vdwg.mxu0
  %v928 = vadd.f32 %v884, %v906
  %v929 = vadd.f32 %v885, %v926
  %v930 = vmul.f32 %v928, 0.5
  %v931 = vtanh.pop %v930
  %v932 = vmul.f32 %v931, 0.5
  %v933 = vadd.f32 %v932, 0.5
  %v934 = vtanh.pop %v929
  %v935 = vmul.f32 %v929, 0.5
  %v936 = vtanh.pop %v935
  %v937 = vmul.f32 %v936, 0.5
  %v938 = vadd.f32 %v937, 0.5
  %v939 = vmul.f32 %v933, %v875
  %v940 = vmul.f32 %v933, %v934
  %942 = vrot.lane.b32.xlu0 %v940, 64
  %v943 = vpop.permute.xlu0 %942
  %v945 = vadd.f32 %v939, %v943
  %v946 = vtanh.pop %v945
  %v947 = vmul.f32 %v938, %v946
  %949 = vrot.lane.b32.xlu0 %v947, 64
  %v950 = vpop.permute.xlu0 %949
  %952 = vst.msk [vmem:[#allocation2 + $0xa] sm:$0x3] %vm578, %v950
  %953 = vst.msk [vmem:[#allocation2 + $0x2] sm:$0xc] %vm580, %v950
  %v954 = vsel %vm281, %v505, %v459
  %v955 = vsel %vm281, %v506, %v482
  %v956 = vsel %vm309, %v950, 0
  %958 = vmatpush.msra.mxu0 0.0
  %959 = vmatpush.msra.mxu0 0.0
  %960 = vmatpush.msra.mxu0 0.0
  %961 = vmatpush.msra.mxu0 0.0
  %962 = vmatpush.msra.mxu0 0.0
  %963 = vmatpush.msra.mxu0 0.0
  %964 = vmatpush.msra.mxu0 0.0
  %965 = vmatpush.msra.mxu0 0.0
  %966 = vmatpush.msra.mxu0 %v501
  %967 = vmatpush.msra.mxu0 %v499
  %968 = vmatpush.msra.mxu0 %v497
  %969 = vmatpush.msra.mxu0 %v495
  %970 = vmatpush.msra.mxu0 %v493
  %971 = vmatpush.msra.mxu0 %v491
  %972 = vmatpush.msra.mxu0 %v489
  %973 = vmatpush.msra.mxu0 %v487
  %974 = vmatmul.f32.gmra.mxu0 %v956
  %v975 = vpop.f32.mrf.mxu0
  %v976 = vadd.f32 0.0, %v975
  %977 = vdwg.mxu0
  %978 = vmatpush.msra.mxu0 0.0
  %979 = vmatpush.msra.mxu0 0.0
  %980 = vmatpush.msra.mxu0 0.0
  %981 = vmatpush.msra.mxu0 0.0
  %982 = vmatpush.msra.mxu0 0.0
  %983 = vmatpush.msra.mxu0 0.0
  %984 = vmatpush.msra.mxu0 0.0
  %985 = vmatpush.msra.mxu0 0.0
  %986 = vmatpush.msra.mxu0 %v502
  %987 = vmatpush.msra.mxu0 %v500
  %988 = vmatpush.msra.mxu0 %v498
  %989 = vmatpush.msra.mxu0 %v496
  %990 = vmatpush.msra.mxu0 %v494
  %991 = vmatpush.msra.mxu0 %v492
  %992 = vmatpush.msra.mxu0 %v490
  %993 = vmatpush.msra.mxu0 %v488
  %994 = vmatmul.f32.gmra.mxu0 %v956
  %v995 = vpop.f32.mrf.mxu0
  %v996 = vadd.f32 0.0, %v995
  %997 = vdwg.mxu0
  %v998 = vadd.f32 %v954, %v976
  %v999 = vadd.f32 %v955, %v996
  %v1000 = vmul.f32 %v998, 0.5
  %v1001 = vtanh.pop %v1000
  %v1002 = vmul.f32 %v1001, 0.5
  %v1003 = vadd.f32 %v1002, 0.5
  %v1004 = vtanh.pop %v999
  %v1005 = vmul.f32 %v999, 0.5
  %v1006 = vtanh.pop %v1005
  %v1007 = vmul.f32 %v1006, 0.5
  %v1008 = vadd.f32 %v1007, 0.5
  %v1009 = vmul.f32 %v1003, %v945
  %v1010 = vmul.f32 %v1003, %v1004
  %1012 = vrot.lane.b32.xlu0 %v1010, 64
  %v1013 = vpop.permute.xlu0 %1012
  %v1015 = vadd.f32 %v1009, %v1013
  %v1016 = vtanh.pop %v1015
  %v1017 = vmul.f32 %v1008, %v1016
  %1019 = vrot.lane.b32.xlu0 %v1017, 64
  %v1020 = vpop.permute.xlu0 %1019
  %1022 = vst.msk [vmem:[#allocation2 + $0xc] sm:$0x3] %vm578, %v1020
  %1023 = vst.msk [vmem:[#allocation2] sm:$0xc] %vm580, %v1020
  %v1024 = vsel %vm281, %v740, %v736
  %v1025 = vsel %vm281, %v741, %v737
  %v1026 = vsel %vm309, %v1020, 0
  %1028 = vmatpush.msra.mxu0 0.0
  %1029 = vmatpush.msra.mxu0 0.0
  %1030 = vmatpush.msra.mxu0 0.0
  %1031 = vmatpush.msra.mxu0 0.0
  %1032 = vmatpush.msra.mxu0 0.0
  %1033 = vmatpush.msra.mxu0 0.0
  %1034 = vmatpush.msra.mxu0 0.0
  %1035 = vmatpush.msra.mxu0 0.0
  %1036 = vmatpush.msra.mxu0 %v501
  %1037 = vmatpush.msra.mxu0 %v499
  %1038 = vmatpush.msra.mxu0 %v497
  %1039 = vmatpush.msra.mxu0 %v495
  %1040 = vmatpush.msra.mxu0 %v493
  %1041 = vmatpush.msra.mxu0 %v491
  %1042 = vmatpush.msra.mxu0 %v489
  %1043 = vmatpush.msra.mxu0 %v487
  %1044 = vmatmul.f32.gmra.mxu0 %v1026
  %v1045 = vpop.f32.mrf.mxu0
  %v1046 = vadd.f32 0.0, %v1045
  %1047 = vdwg.mxu0
  %1048 = vmatpush.msra.mxu0 0.0
  %1049 = vmatpush.msra.mxu0 0.0
  %1050 = vmatpush.msra.mxu0 0.0
  %1051 = vmatpush.msra.mxu0 0.0
  %1052 = vmatpush.msra.mxu0 0.0
  %1053 = vmatpush.msra.mxu0 0.0
  %1054 = vmatpush.msra.mxu0 0.0
  %1055 = vmatpush.msra.mxu0 0.0
  %1056 = vmatpush.msra.mxu0 %v502
  %1057 = vmatpush.msra.mxu0 %v500
  %1058 = vmatpush.msra.mxu0 %v498
  %1059 = vmatpush.msra.mxu0 %v496
  %1060 = vmatpush.msra.mxu0 %v494
  %1061 = vmatpush.msra.mxu0 %v492
  %1062 = vmatpush.msra.mxu0 %v490
  %1063 = vmatpush.msra.mxu0 %v488
  %1064 = vmatmul.f32.gmra.mxu0 %v1026
  %v1065 = vpop.f32.mrf.mxu0
  %v1066 = vadd.f32 0.0, %v1065
  %1067 = vdwg.mxu0
  %v1068 = vadd.f32 %v1024, %v1046
  %v1069 = vadd.f32 %v1025, %v1066
  %v1070 = vmul.f32 %v1068, 0.5
  %v1071 = vtanh.pop %v1070
  %v1072 = vmul.f32 %v1071, 0.5
  %v1073 = vadd.f32 %v1072, 0.5
  %v1074 = vtanh.pop %v1069
  %v1075 = vmul.f32 %v1069, 0.5
  %v1076 = vtanh.pop %v1075
  %v1077 = vmul.f32 %v1076, 0.5
  %v1078 = vadd.f32 %v1077, 0.5
  %v1079 = vmul.f32 %v1073, %v1015
  %v1080 = vmul.f32 %v1073, %v1074
  %1082 = vrot.lane.b32.xlu0 %v1080, 64
  %v1083 = vpop.permute.xlu0 %1082
  %v1085 = vadd.f32 %v1079, %v1083
  %v1086 = vtanh.pop %v1085
  %v1087 = vmul.f32 %v1078, %v1086
  %1089 = vrot.lane.b32.xlu0 %v1087, 64
  %v1090 = vpop.permute.xlu0 %1089
  %1092 = vst.msk [vmem:[#allocation2 + $0xe] sm:$0x3] %vm578, %v1090
  %1093 = vst.msk [vmem:[#allocation2 - $0x2] sm:$0xc] %vm580, %v1090
  %v1094 = vld [vmem:[#allocation2] sm:$0xff]
  %v1095 = vld [vmem:[#allocation2 + $0x8] sm:$0xff]
  %v1096 = vld [vmem:[%s8] sm:$0xff]
  %v1097 = vld [vmem:[%s8 + $0x8] sm:$0xff]
  %v1098 = vld [vmem:[%s8 + $0x10] sm:$0xff]
  %v1099 = vld [vmem:[%s8 + $0x18] sm:$0xff]
  %v1100 = vld [vmem:[%s8 + $0x20] sm:$0xff]
  %v1101 = vld [vmem:[%s8 + $0x28] sm:$0xff]
  %v1102 = vld [vmem:[%s8 + $0x30] sm:$0xff]
  %v1103 = vld [vmem:[%s8 + $0x38] sm:$0xff]
  %v1104 = vld [vmem:[%s9] sm:$0x1]
  %v1106 = vperm.slane %v1104, 0
  %v1109 = vsel %vm309, %v1094, 0
  %v1112 = vsel %vm309, %v1095, 0
  %1114 = vmatpush.msra.mxu0 0.0
  %1115 = vmatpush.msra.mxu0 0.0
  %1116 = vmatpush.msra.mxu0 0.0
  %1117 = vmatpush.msra.mxu0 0.0
  %1118 = vmatpush.msra.mxu0 0.0
  %1119 = vmatpush.msra.mxu0 0.0
  %1120 = vmatpush.msra.mxu0 0.0
  %1121 = vmatpush.msra.mxu0 0.0
  %1122 = vmatpush.msra.mxu0 %v1103
  %1123 = vmatpush.msra.mxu0 %v1102
  %1124 = vmatpush.msra.mxu0 %v1101
  %1125 = vmatpush.msra.mxu0 %v1100
  %1126 = vmatpush.msra.mxu0 %v1099
  %1127 = vmatpush.msra.mxu0 %v1098
  %1128 = vmatpush.msra.mxu0 %v1097
  %1129 = vmatpush.msra.mxu0 %v1096
  %1130 = vmatmul.f32.gmra.mxu0 %v1109
  %v1131 = vpop.f32.mrf.mxu0
  %v1132 = vadd.f32 %v1106, %v1131
  %1133 = vmatmul.f32.gmra.mxu0 %v1112
  %v1134 = vpop.f32.mrf.mxu0
  %v1135 = vadd.f32 %v1106, %v1134
  %1136 = vdwg.mxu0
  %1137 = vst [vmem:[%s10] sm:$0xff] %v1132
  %1138 = vst [vmem:[%s10 + $0x8] sm:$0xff] %v1135
  // Predicated region
  $region42: #{forward.1} parent=0 // pred_check
    _
  $region43: #{forward.1} parent=0 // pred_check_branch
    %1140 = sbr.rel (0) target = $region45
  $region44: #{forward.1} parent=0 // pred_region
    _
  $region45: #{forward.1} parent=0 // pred_fallthru
    _
  // Predicated region
  $region46: #{forward.1} parent=0 // pred_check
    _
  $region47: #{forward.1} parent=0 // pred_check_branch
    %1142 = sbr.rel (0) target = $region49
  $region48: #{forward.1} parent=0 // pred_region
    _
  $region49: #{forward.1} parent=0 // pred_fallthru
    _

</llo_original>
